<compile_context>
chip_gen: v7x
topology: tpu7x:2x2x1
jax: 0.10.0
libtpu: 0.0.40
codegen_flags: <defaults>
</compile_context>

<pallas_src>
import functools

import jax
import jax.numpy as jnp
from jax.experimental import pallas as pl
from jax.experimental.pallas import tpu as pltpu


def _round_up(x, m):
    return ((x + m - 1) // m) * m


def _dc_loss_kernel(inp_ref, tgt_ref, dsum_ref, tsum_ref, *,
                    total_t, t_block, n_t_blocks, n_t_per_split,
                    need_edge_mask):
    """Accumulate per-lane partial sums of (target - input) and target**2.

    dsum_ref / tsum_ref are (br, 128) f32 output blocks that stay resident
    across the (last, "arbitrary") T grid axis -- they are the accumulators.
    """
    s = pl.program_id(0)      # T-split index (>1 only when rows fit one block)
    k = pl.program_id(2)      # T block within this split

    @pl.when(k == 0)
    def _():
        dsum_ref[...] = jnp.zeros_like(dsum_ref)
        tsum_ref[...] = jnp.zeros_like(tsum_ref)

    n_groups = t_block // 128
    br = dsum_ref.shape[0]

    def accumulate(col_base):
        # col_base: None for the unmasked fast path, else the global column
        # index of this block's first lane (traced scalar).
        d_acc = dsum_ref[...]
        t_acc = tsum_ref[...]
        for g in range(n_groups):
            sl = pl.ds(g * 128, 128)            # static, 128-lane aligned
            x = inp_ref[:, sl].astype(jnp.float32)
            y = tgt_ref[:, sl].astype(jnp.float32)
            d = y - x
            ysq = y * y
            if col_base is not None:
                col = jax.lax.broadcasted_iota(jnp.int32, (br, 128), 1)
                valid = (col + (col_base + g * 128)) < total_t
                d = jnp.where(valid, d, 0.0)
                ysq = jnp.where(valid, ysq, 0.0)
            d_acc = d_acc + d
            t_acc = t_acc + ysq
        dsum_ref[...] = d_acc
        tsum_ref[...] = t_acc

    if need_edge_mask:
        gk = s * n_t_per_split + k              # un-clamped global T-block idx
        is_edge = gk >= (n_t_blocks - 1)        # last real block or overflow

        @pl.when(jnp.logical_not(is_edge))
        def _():
            accumulate(None)                    # interior blocks: no masking

        @pl.when(is_edge)
        def _():
            accumulate(gk * t_block)            # ragged tail / overflow step
    else:
        accumulate(None)


def dc_loss(inp, tgt, eps=1e-8, reduction="mean",
            block_rows=256, block_t=None):
    """DC loss. inp/tgt: (batch, nchs, ..., T). Default reduction='mean'."""
    assert inp.shape == tgt.shape
    lead = inp.shape[:-1]
    t = inp.shape[-1]
    rows = 1
    for d in lead:
        rows *= d

    inp2 = inp.reshape(rows, t)
    tgt2 = tgt.reshape(rows, t)
    itemsize = jnp.dtype(inp.dtype).itemsize

    # Row tile: multiple of 16 covers f32 (8,128) and bf16 (16,128) tiling.
    br = _round_up(min(block_rows, _round_up(rows, 16)), 16)

    # T tile: multiple of 128 lanes, sized so each input block is ~4 MiB
    # regardless of dtype (keeps bytes/step constant so the ~0.35 us/step
    # overhead stays small on v7x), capped to bound kernel unrolling and by
    # the padded T extent.
    t_pad = _round_up(t, 128)
    if block_t is None:
        target_bytes = 4 * 1024 * 1024
        tk = max(128, (target_bytes // (br * itemsize)) // 128 * 128)
        tk = min(tk, 8192, t_pad)
    else:
        tk = min(_round_up(block_t, 128), t_pad)

    n_row_blocks = pl.cdiv(rows, br)
    n_t_blocks = pl.cdiv(t, tk)

    # With a single row block the row axis alone can't feed both v7x
    # TensorCores: split the T range into two parallel halves that accumulate
    # into separate partial slabs (combined below in plain JAX).
    n_splits = 2 if (n_row_blocks == 1 and n_t_blocks >= 2) else 1
    n_t_per_split = pl.cdiv(n_t_blocks, n_splits)
    has_overflow = n_splits * n_t_per_split != n_t_blocks
    need_edge_mask = (t % tk != 0) or has_overflow

    out_rows = n_row_blocks * br

    kernel = functools.partial(
        _dc_loss_kernel,
        total_t=t, t_block=tk, n_t_blocks=n_t_blocks,
        n_t_per_split=n_t_per_split, need_edge_mask=need_edge_mask)

    if has_overflow:
        def in_map(s, i, k):
            # Clamp so the overflow step never DMAs out of bounds; its
            # contribution is fully masked inside the kernel.
            return (i, jnp.minimum(s * n_t_per_split + k, n_t_blocks - 1))
    else:
        def in_map(s, i, k):
            return (i, s * n_t_per_split + k)

    out_map = lambda s, i, k: (s, i, 0)
    out_struct = jax.ShapeDtypeStruct((n_splits, out_rows, 128), jnp.float32)

    dsum, tsum = pl.pallas_call(
        kernel,
        out_shape=(out_struct, out_struct),
        grid_spec=pl.GridSpec(
            grid=(n_splits, n_row_blocks, n_t_per_split),
            in_specs=[
                pl.BlockSpec((br, tk), in_map),
                pl.BlockSpec((br, tk), in_map),
            ],
            out_specs=(
                pl.BlockSpec((None, br, 128), out_map),
                pl.BlockSpec((None, br, 128), out_map),
            ),
        ),
        compiler_params=pltpu.CompilerParams(
            # T-split and row axes are independent -> parallel (v7x dual TC);
            # T is the reduction / accumulator axis -> arbitrary, kept last.
            dimension_semantics=("parallel", "parallel", "arbitrary"),
            # 2 inputs x 2 pipeline buffers x ~4 MiB blocks (~16 MiB) exceeds
            # the v5e (16 MiB) / v7x (32 MiB) default scoped limits; 48 MiB
            # fits every generation's physical VMEM with headroom.
            vmem_limit_bytes=48 * 1024 * 1024,
        ),
        cost_estimate=pl.CostEstimate(
            flops=4 * rows * t,
            transcendentals=0,
            bytes_accessed=2 * rows * t * itemsize
            + 2 * n_splits * out_rows * 128 * 4,
        ),
    )(inp2, tgt2)

    # Tiny finalize in plain JAX: combine splits + lanes, drop padded rows
    # *before* any cross-row op (padded rows hold garbage), then divide.
    dsum_r = jnp.sum(dsum, axis=(0, 2))[:rows]     # sum(target - input) per row
    tsum_r = jnp.sum(tsum, axis=(0, 2))[:rows]     # sum(target ** 2) per row
    inv_t = jnp.float32(1.0 / t)
    num = (dsum_r * inv_t) ** 2
    denom = tsum_r * inv_t + jnp.float32(eps)
    losses = (num / denom).reshape(lead)

    if reduction == "mean":
        return losses.mean()
    if reduction == "sum":
        return losses.sum()
    return losses


if __name__ == "__main__":
    key = jax.random.PRNGKey(0)

    def reference(x, y, eps=1e-8, reduction="mean"):
        num = jnp.mean(y - x, axis=-1) ** 2
        denom = jnp.mean(y ** 2, axis=-1) + eps
        losses = num / denom
        if reduction == "mean":
            return losses.mean()
        if reduction == "sum":
            return losses.sum()
        return losses

    cases = [
        ((2, 3, 3000), "mean"),     # ragged T, single row block
        ((2, 3, 20000), "mean"),    # single row block -> T-split path + overflow step
        ((10, 30, 2048), "none"),   # multiple (padded) row blocks, exact T tiling
    ]
    ok = True
    for shape, red in cases:
        k1, k2, key = jax.random.split(key, 3)
        x = jax.random.normal(k1, shape, dtype=jnp.float32)  # input
        y = jax.random.normal(k2, shape, dtype=jnp.float32)  # target
        out = dc_loss(x, y, reduction=red)
        jax.block_until_ready(out)
        ref = reference(x, y, reduction=red)
        if not jnp.allclose(out, ref, rtol=1e-5, atol=1e-5):
            ok = False
            print("MISMATCH", shape, red, out, ref)
    if ok:
        print("KERNEL_OK")
</pallas_src>

<mosaic_0001>
module attributes {stable_mosaic.version = 11 : i64} {
  func.func @_dc_loss_kernel(%arg0: i32, %arg1: i32, %arg2: i32, %arg3: memref<16x3072xf32, #tpu.memory_space<vmem>>, %arg4: memref<16x3072xf32, #tpu.memory_space<vmem>>, %arg5: memref<1x16x128xf32, #tpu.memory_space<vmem>>, %arg6: memref<1x16x128xf32, #tpu.memory_space<vmem>>) attributes {dimension_semantics = [#tpu.dimension_semantics<parallel>, #tpu.dimension_semantics<parallel>, #tpu.dimension_semantics<arbitrary>], iteration_bounds = array<i64: 1, 1, 1>, scalar_prefetch = 0 : i64, scratch_operands = 0 : i64, tpu.core_type = #tpu.core_type<tc>, window_params = [{transform_indices = @transform_0, window_bounds = array<i64: 16, 3072>}, {transform_indices = @transform_1, window_bounds = array<i64: 16, 3072>}, {transform_indices = @transform_2, window_bounds = array<i64: 1, 16, 128>}, {transform_indices = @transform_3, window_bounds = array<i64: 1, 16, 128>}]} {
    %c0_i32 = arith.constant 0 : i32
    %0 = arith.cmpi eq, %arg2, %c0_i32 : i32
    %1 = arith.extui %0 : i1 to i32
    %c0_i32_0 = arith.constant 0 : i32
    %2 = arith.cmpi ne, %1, %c0_i32_0 : i32
    scf.if %2 {
      %cst = arith.constant 0.000000e+00 : f32
      %11 = vector.broadcast %cst : f32 to vector<16x128xf32>
      %c0 = arith.constant 0 : index
      %c0_4 = arith.constant 0 : index
      %c0_5 = arith.constant 0 : index
      %12 = vector.load %arg5[%c0, %c0_4, %c0_5] : memref<1x16x128xf32, #tpu.memory_space<vmem>>, vector<1x16x128xf32>
      %13 = vector.shape_cast %12 : vector<1x16x128xf32> to vector<16x128xf32>
      %14 = vector.shape_cast %11 : vector<16x128xf32> to vector<1x16x128xf32>
      tpu.vector_store %arg5[%c0, %c0_4, %c0_5], %14 {strides = array<i32>} : memref<1x16x128xf32, #tpu.memory_space<vmem>>, vector<1x16x128xf32>,
      %cst_6 = arith.constant 0.000000e+00 : f32
      %15 = vector.broadcast %cst_6 : f32 to vector<16x128xf32>
      %c0_7 = arith.constant 0 : index
      %c0_8 = arith.constant 0 : index
      %c0_9 = arith.constant 0 : index
      %16 = vector.load %arg6[%c0_7, %c0_8, %c0_9] : memref<1x16x128xf32, #tpu.memory_space<vmem>>, vector<1x16x128xf32>
      %17 = vector.shape_cast %16 : vector<1x16x128xf32> to vector<16x128xf32>
      %18 = vector.shape_cast %15 : vector<16x128xf32> to vector<1x16x128xf32>
      tpu.vector_store %arg6[%c0_7, %c0_8, %c0_9], %18 {strides = array<i32>} : memref<1x16x128xf32, #tpu.memory_space<vmem>>, vector<1x16x128xf32>,
    } else {
    }
    %c1_i32 = arith.constant 1 : i32
    %3 = arith.muli %arg0, %c1_i32 : i32
    %4 = arith.addi %3, %arg2 : i32
    %c0_i32_1 = arith.constant 0 : i32
    %5 = arith.cmpi sge, %4, %c0_i32_1 : i32
    %true = arith.constant true
    %6 = arith.xori %5, %true : i1
    %7 = arith.extui %6 : i1 to i32
    %c0_i32_2 = arith.constant 0 : i32
    %8 = arith.cmpi ne, %7, %c0_i32_2 : i32
    scf.if %8 {
      %c0 = arith.constant 0 : index
      %c0_4 = arith.constant 0 : index
      %c0_5 = arith.constant 0 : index
      %11 = vector.load %arg5[%c0, %c0_4, %c0_5] : memref<1x16x128xf32, #tpu.memory_space<vmem>>, vector<1x16x128xf32>
      %12 = vector.shape_cast %11 : vector<1x16x128xf32> to vector<16x128xf32>
      %c0_6 = arith.constant 0 : index
      %c0_7 = arith.constant 0 : index
      %c0_8 = arith.constant 0 : index
      %13 = vector.load %arg6[%c0_6, %c0_7, %c0_8] : memref<1x16x128xf32, #tpu.memory_space<vmem>>, vector<1x16x128xf32>
      %14 = vector.shape_cast %13 : vector<1x16x128xf32> to vector<16x128xf32>
      %c0_9 = arith.constant 0 : index
      %c0_10 = arith.constant 0 : index
      %15 = vector.load %arg3[%c0_9, %c0_10] : memref<16x3072xf32, #tpu.memory_space<vmem>>, vector<16x128xf32>
      %c0_11 = arith.constant 0 : index
      %c0_12 = arith.constant 0 : index
      %16 = vector.load %arg4[%c0_11, %c0_12] : memref<16x3072xf32, #tpu.memory_space<vmem>>, vector<16x128xf32>
      %17 = arith.subf %16, %15 : vector<16x128xf32>
      %18 = arith.mulf %16, %16 : vector<16x128xf32>
      %19 = arith.addf %12, %17 : vector<16x128xf32>
      %20 = arith.addf %14, %18 : vector<16x128xf32>
      %c0_13 = arith.constant 0 : index
      %c128 = arith.constant 128 : index
      %21 = vector.load %arg3[%c0_13, %c128] : memref<16x3072xf32, #tpu.memory_space<vmem>>, vector<16x128xf32>
      %c0_14 = arith.constant 0 : index
      %c128_15 = arith.constant 128 : index
      %22 = vector.load %arg4[%c0_14, %c128_15] : memref<16x3072xf32, #tpu.memory_space<vmem>>, vector<16x128xf32>
      %23 = arith.subf %22, %21 : vector<16x128xf32>
      %24 = arith.mulf %22, %22 : vector<16x128xf32>
      %25 = arith.addf %19, %23 : vector<16x128xf32>
      %26 = arith.addf %20, %24 : vector<16x128xf32>
      %c0_16 = arith.constant 0 : index
      %c256 = arith.constant 256 : index
      %27 = vector.load %arg3[%c0_16, %c256] : memref<16x3072xf32, #tpu.memory_space<vmem>>, vector<16x128xf32>
      %c0_17 = arith.constant 0 : index
      %c256_18 = arith.constant 256 : index
      %28 = vector.load %arg4[%c0_17, %c256_18] : memref<16x3072xf32, #tpu.memory_space<vmem>>, vector<16x128xf32>
      %29 = arith.subf %28, %27 : vector<16x128xf32>
      %30 = arith.mulf %28, %28 : vector<16x128xf32>
      %31 = arith.addf %25, %29 : vector<16x128xf32>
      %32 = arith.addf %26, %30 : vector<16x128xf32>
      %c0_19 = arith.constant 0 : index
      %c384 = arith.constant 384 : index
      %33 = vector.load %arg3[%c0_19, %c384] : memref<16x3072xf32, #tpu.memory_space<vmem>>, vector<16x128xf32>
      %c0_20 = arith.constant 0 : index
      %c384_21 = arith.constant 384 : index
      %34 = vector.load %arg4[%c0_20, %c384_21] : memref<16x3072xf32, #tpu.memory_space<vmem>>, vector<16x128xf32>
      %35 = arith.subf %34, %33 : vector<16x128xf32>
      %36 = arith.mulf %34, %34 : vector<16x128xf32>
      %37 = arith.addf %31, %35 : vector<16x128xf32>
      %38 = arith.addf %32, %36 : vector<16x128xf32>
      %c0_22 = arith.constant 0 : index
      %c512 = arith.constant 512 : index
      %39 = vector.load %arg3[%c0_22, %c512] : memref<16x3072xf32, #tpu.memory_space<vmem>>, vector<16x128xf32>
      %c0_23 = arith.constant 0 : index
      %c512_24 = arith.constant 512 : index
      %40 = vector.load %arg4[%c0_23, %c512_24] : memref<16x3072xf32, #tpu.memory_space<vmem>>, vector<16x128xf32>
      %41 = arith.subf %40, %39 : vector<16x128xf32>
      %42 = arith.mulf %40, %40 : vector<16x128xf32>
      %43 = arith.addf %37, %41 : vector<16x128xf32>
      %44 = arith.addf %38, %42 : vector<16x128xf32>
      %c0_25 = arith.constant 0 : index
      %c640 = arith.constant 640 : index
      %45 = vector.load %arg3[%c0_25, %c640] : memref<16x3072xf32, #tpu.memory_space<vmem>>, vector<16x128xf32>
      %c0_26 = arith.constant 0 : index
      %c640_27 = arith.constant 640 : index
      %46 = vector.load %arg4[%c0_26, %c640_27] : memref<16x3072xf32, #tpu.memory_space<vmem>>, vector<16x128xf32>
      %47 = arith.subf %46, %45 : vector<16x128xf32>
      %48 = arith.mulf %46, %46 : vector<16x128xf32>
      %49 = arith.addf %43, %47 : vector<16x128xf32>
      %50 = arith.addf %44, %48 : vector<16x128xf32>
      %c0_28 = arith.constant 0 : index
      %c768 = arith.constant 768 : index
      %51 = vector.load %arg3[%c0_28, %c768] : memref<16x3072xf32, #tpu.memory_space<vmem>>, vector<16x128xf32>
      %c0_29 = arith.constant 0 : index
      %c768_30 = arith.constant 768 : index
      %52 = vector.load %arg4[%c0_29, %c768_30] : memref<16x3072xf32, #tpu.memory_space<vmem>>, vector<16x128xf32>
      %53 = arith.subf %52, %51 : vector<16x128xf32>
      %54 = arith.mulf %52, %52 : vector<16x128xf32>
      %55 = arith.addf %49, %53 : vector<16x128xf32>
      %56 = arith.addf %50, %54 : vector<16x128xf32>
      %c0_31 = arith.constant 0 : index
      %c896 = arith.constant 896 : index
      %57 = vector.load %arg3[%c0_31, %c896] : memref<16x3072xf32, #tpu.memory_space<vmem>>, vector<16x128xf32>
      %c0_32 = arith.constant 0 : index
      %c896_33 = arith.constant 896 : index
      %58 = vector.load %arg4[%c0_32, %c896_33] : memref<16x3072xf32, #tpu.memory_space<vmem>>, vector<16x128xf32>
      %59 = arith.subf %58, %57 : vector<16x128xf32>
      %60 = arith.mulf %58, %58 : vector<16x128xf32>
      %61 = arith.addf %55, %59 : vector<16x128xf32>
      %62 = arith.addf %56, %60 : vector<16x128xf32>
      %c0_34 = arith.constant 0 : index
      %c1024 = arith.constant 1024 : index
      %63 = vector.load %arg3[%c0_34, %c1024] : memref<16x3072xf32, #tpu.memory_space<vmem>>, vector<16x128xf32>
      %c0_35 = arith.constant 0 : index
      %c1024_36 = arith.constant 1024 : index
      %64 = vector.load %arg4[%c0_35, %c1024_36] : memref<16x3072xf32, #tpu.memory_space<vmem>>, vector<16x128xf32>
      %65 = arith.subf %64, %63 : vector<16x128xf32>
      %66 = arith.mulf %64, %64 : vector<16x128xf32>
      %67 = arith.addf %61, %65 : vector<16x128xf32>
      %68 = arith.addf %62, %66 : vector<16x128xf32>
      %c0_37 = arith.constant 0 : index
      %c1152 = arith.constant 1152 : index
      %69 = vector.load %arg3[%c0_37, %c1152] : memref<16x3072xf32, #tpu.memory_space<vmem>>, vector<16x128xf32>
      %c0_38 = arith.constant 0 : index
      %c1152_39 = arith.constant 1152 : index
      %70 = vector.load %arg4[%c0_38, %c1152_39] : memref<16x3072xf32, #tpu.memory_space<vmem>>, vector<16x128xf32>
      %71 = arith.subf %70, %69 : vector<16x128xf32>
      %72 = arith.mulf %70, %70 : vector<16x128xf32>
      %73 = arith.addf %67, %71 : vector<16x128xf32>
      %74 = arith.addf %68, %72 : vector<16x128xf32>
      %c0_40 = arith.constant 0 : index
      %c1280 = arith.constant 1280 : index
      %75 = vector.load %arg3[%c0_40, %c1280] : memref<16x3072xf32, #tpu.memory_space<vmem>>, vector<16x128xf32>
      %c0_41 = arith.constant 0 : index
      %c1280_42 = arith.constant 1280 : index
      %76 = vector.load %arg4[%c0_41, %c1280_42] : memref<16x3072xf32, #tpu.memory_space<vmem>>, vector<16x128xf32>
      %77 = arith.subf %76, %75 : vector<16x128xf32>
      %78 = arith.mulf %76, %76 : vector<16x128xf32>
      %79 = arith.addf %73, %77 : vector<16x128xf32>
      %80 = arith.addf %74, %78 : vector<16x128xf32>
      %c0_43 = arith.constant 0 : index
      %c1408 = arith.constant 1408 : index
      %81 = vector.load %arg3[%c0_43, %c1408] : memref<16x3072xf32, #tpu.memory_space<vmem>>, vector<16x128xf32>
      %c0_44 = arith.constant 0 : index
      %c1408_45 = arith.constant 1408 : index
      %82 = vector.load %arg4[%c0_44, %c1408_45] : memref<16x3072xf32, #tpu.memory_space<vmem>>, vector<16x128xf32>
      %83 = arith.subf %82, %81 : vector<16x128xf32>
      %84 = arith.mulf %82, %82 : vector<16x128xf32>
      %85 = arith.addf %79, %83 : vector<16x128xf32>
      %86 = arith.addf %80, %84 : vector<16x128xf32>
      %c0_46 = arith.constant 0 : index
      %c1536 = arith.constant 1536 : index
      %87 = vector.load %arg3[%c0_46, %c1536] : memref<16x3072xf32, #tpu.memory_space<vmem>>, vector<16x128xf32>
      %c0_47 = arith.constant 0 : index
      %c1536_48 = arith.constant 1536 : index
      %88 = vector.load %arg4[%c0_47, %c1536_48] : memref<16x3072xf32, #tpu.memory_space<vmem>>, vector<16x128xf32>
      %89 = arith.subf %88, %87 : vector<16x128xf32>
      %90 = arith.mulf %88, %88 : vector<16x128xf32>
      %91 = arith.addf %85, %89 : vector<16x128xf32>
      %92 = arith.addf %86, %90 : vector<16x128xf32>
      %c0_49 = arith.constant 0 : index
      %c1664 = arith.constant 1664 : index
      %93 = vector.load %arg3[%c0_49, %c1664] : memref<16x3072xf32, #tpu.memory_space<vmem>>, vector<16x128xf32>
      %c0_50 = arith.constant 0 : index
      %c1664_51 = arith.constant 1664 : index
      %94 = vector.load %arg4[%c0_50, %c1664_51] : memref<16x3072xf32, #tpu.memory_space<vmem>>, vector<16x128xf32>
      %95 = arith.subf %94, %93 : vector<16x128xf32>
      %96 = arith.mulf %94, %94 : vector<16x128xf32>
      %97 = arith.addf %91, %95 : vector<16x128xf32>
      %98 = arith.addf %92, %96 : vector<16x128xf32>
      %c0_52 = arith.constant 0 : index
      %c1792 = arith.constant 1792 : index
      %99 = vector.load %arg3[%c0_52, %c1792] : memref<16x3072xf32, #tpu.memory_space<vmem>>, vector<16x128xf32>
      %c0_53 = arith.constant 0 : index
      %c1792_54 = arith.constant 1792 : index
      %100 = vector.load %arg4[%c0_53, %c1792_54] : memref<16x3072xf32, #tpu.memory_space<vmem>>, vector<16x128xf32>
      %101 = arith.subf %100, %99 : vector<16x128xf32>
      %102 = arith.mulf %100, %100 : vector<16x128xf32>
      %103 = arith.addf %97, %101 : vector<16x128xf32>
      %104 = arith.addf %98, %102 : vector<16x128xf32>
      %c0_55 = arith.constant 0 : index
      %c1920 = arith.constant 1920 : index
      %105 = vector.load %arg3[%c0_55, %c1920] : memref<16x3072xf32, #tpu.memory_space<vmem>>, vector<16x128xf32>
      %c0_56 = arith.constant 0 : index
      %c1920_57 = arith.constant 1920 : index
      %106 = vector.load %arg4[%c0_56, %c1920_57] : memref<16x3072xf32, #tpu.memory_space<vmem>>, vector<16x128xf32>
      %107 = arith.subf %106, %105 : vector<16x128xf32>
      %108 = arith.mulf %106, %106 : vector<16x128xf32>
      %109 = arith.addf %103, %107 : vector<16x128xf32>
      %110 = arith.addf %104, %108 : vector<16x128xf32>
      %c0_58 = arith.constant 0 : index
      %c2048 = arith.constant 2048 : index
      %111 = vector.load %arg3[%c0_58, %c2048] : memref<16x3072xf32, #tpu.memory_space<vmem>>, vector<16x128xf32>
      %c0_59 = arith.constant 0 : index
      %c2048_60 = arith.constant 2048 : index
      %112 = vector.load %arg4[%c0_59, %c2048_60] : memref<16x3072xf32, #tpu.memory_space<vmem>>, vector<16x128xf32>
      %113 = arith.subf %112, %111 : vector<16x128xf32>
      %114 = arith.mulf %112, %112 : vector<16x128xf32>
      %115 = arith.addf %109, %113 : vector<16x128xf32>
      %116 = arith.addf %110, %114 : vector<16x128xf32>
      %c0_61 = arith.constant 0 : index
      %c2176 = arith.constant 2176 : index
      %117 = vector.load %arg3[%c0_61, %c2176] : memref<16x3072xf32, #tpu.memory_space<vmem>>, vector<16x128xf32>
      %c0_62 = arith.constant 0 : index
      %c2176_63 = arith.constant 2176 : index
      %118 = vector.load %arg4[%c0_62, %c2176_63] : memref<16x3072xf32, #tpu.memory_space<vmem>>, vector<16x128xf32>
      %119 = arith.subf %118, %117 : vector<16x128xf32>
      %120 = arith.mulf %118, %118 : vector<16x128xf32>
      %121 = arith.addf %115, %119 : vector<16x128xf32>
      %122 = arith.addf %116, %120 : vector<16x128xf32>
      %c0_64 = arith.constant 0 : index
      %c2304 = arith.constant 2304 : index
      %123 = vector.load %arg3[%c0_64, %c2304] : memref<16x3072xf32, #tpu.memory_space<vmem>>, vector<16x128xf32>
      %c0_65 = arith.constant 0 : index
      %c2304_66 = arith.constant 2304 : index
      %124 = vector.load %arg4[%c0_65, %c2304_66] : memref<16x3072xf32, #tpu.memory_space<vmem>>, vector<16x128xf32>
      %125 = arith.subf %124, %123 : vector<16x128xf32>
      %126 = arith.mulf %124, %124 : vector<16x128xf32>
      %127 = arith.addf %121, %125 : vector<16x128xf32>
      %128 = arith.addf %122, %126 : vector<16x128xf32>
      %c0_67 = arith.constant 0 : index
      %c2432 = arith.constant 2432 : index
      %129 = vector.load %arg3[%c0_67, %c2432] : memref<16x3072xf32, #tpu.memory_space<vmem>>, vector<16x128xf32>
      %c0_68 = arith.constant 0 : index
      %c2432_69 = arith.constant 2432 : index
      %130 = vector.load %arg4[%c0_68, %c2432_69] : memref<16x3072xf32, #tpu.memory_space<vmem>>, vector<16x128xf32>
      %131 = arith.subf %130, %129 : vector<16x128xf32>
      %132 = arith.mulf %130, %130 : vector<16x128xf32>
      %133 = arith.addf %127, %131 : vector<16x128xf32>
      %134 = arith.addf %128, %132 : vector<16x128xf32>
      %c0_70 = arith.constant 0 : index
      %c2560 = arith.constant 2560 : index
      %135 = vector.load %arg3[%c0_70, %c2560] : memref<16x3072xf32, #tpu.memory_space<vmem>>, vector<16x128xf32>
      %c0_71 = arith.constant 0 : index
      %c2560_72 = arith.constant 2560 : index
      %136 = vector.load %arg4[%c0_71, %c2560_72] : memref<16x3072xf32, #tpu.memory_space<vmem>>, vector<16x128xf32>
      %137 = arith.subf %136, %135 : vector<16x128xf32>
      %138 = arith.mulf %136, %136 : vector<16x128xf32>
      %139 = arith.addf %133, %137 : vector<16x128xf32>
      %140 = arith.addf %134, %138 : vector<16x128xf32>
      %c0_73 = arith.constant 0 : index
      %c2688 = arith.constant 2688 : index
      %141 = vector.load %arg3[%c0_73, %c2688] : memref<16x3072xf32, #tpu.memory_space<vmem>>, vector<16x128xf32>
      %c0_74 = arith.constant 0 : index
      %c2688_75 = arith.constant 2688 : index
      %142 = vector.load %arg4[%c0_74, %c2688_75] : memref<16x3072xf32, #tpu.memory_space<vmem>>, vector<16x128xf32>
      %143 = arith.subf %142, %141 : vector<16x128xf32>
      %144 = arith.mulf %142, %142 : vector<16x128xf32>
      %145 = arith.addf %139, %143 : vector<16x128xf32>
      %146 = arith.addf %140, %144 : vector<16x128xf32>
      %c0_76 = arith.constant 0 : index
      %c2816 = arith.constant 2816 : index
      %147 = vector.load %arg3[%c0_76, %c2816] : memref<16x3072xf32, #tpu.memory_space<vmem>>, vector<16x128xf32>
      %c0_77 = arith.constant 0 : index
      %c2816_78 = arith.constant 2816 : index
      %148 = vector.load %arg4[%c0_77, %c2816_78] : memref<16x3072xf32, #tpu.memory_space<vmem>>, vector<16x128xf32>
      %149 = arith.subf %148, %147 : vector<16x128xf32>
      %150 = arith.mulf %148, %148 : vector<16x128xf32>
      %151 = arith.addf %145, %149 : vector<16x128xf32>
      %152 = arith.addf %146, %150 : vector<16x128xf32>
      %c0_79 = arith.constant 0 : index
      %c2944 = arith.constant 2944 : index
      %153 = vector.load %arg3[%c0_79, %c2944] : memref<16x3072xf32, #tpu.memory_space<vmem>>, vector<16x128xf32>
      %c0_80 = arith.constant 0 : index
      %c2944_81 = arith.constant 2944 : index
      %154 = vector.load %arg4[%c0_80, %c2944_81] : memref<16x3072xf32, #tpu.memory_space<vmem>>, vector<16x128xf32>
      %155 = arith.subf %154, %153 : vector<16x128xf32>
      %156 = arith.mulf %154, %154 : vector<16x128xf32>
      %157 = arith.addf %151, %155 : vector<16x128xf32>
      %158 = arith.addf %152, %156 : vector<16x128xf32>
      %c0_82 = arith.constant 0 : index
      %c0_83 = arith.constant 0 : index
      %c0_84 = arith.constant 0 : index
      %159 = vector.load %arg5[%c0_82, %c0_83, %c0_84] : memref<1x16x128xf32, #tpu.memory_space<vmem>>, vector<1x16x128xf32>
      %160 = vector.shape_cast %159 : vector<1x16x128xf32> to vector<16x128xf32>
      %161 = vector.shape_cast %157 : vector<16x128xf32> to vector<1x16x128xf32>
      tpu.vector_store %arg5[%c0_82, %c0_83, %c0_84], %161 {strides = array<i32>} : memref<1x16x128xf32, #tpu.memory_space<vmem>>, vector<1x16x128xf32>,
      %c0_85 = arith.constant 0 : index
      %c0_86 = arith.constant 0 : index
      %c0_87 = arith.constant 0 : index
      %162 = vector.load %arg6[%c0_85, %c0_86, %c0_87] : memref<1x16x128xf32, #tpu.memory_space<vmem>>, vector<1x16x128xf32>
      %163 = vector.shape_cast %162 : vector<1x16x128xf32> to vector<16x128xf32>
      %164 = vector.shape_cast %158 : vector<16x128xf32> to vector<1x16x128xf32>
      tpu.vector_store %arg6[%c0_85, %c0_86, %c0_87], %164 {strides = array<i32>} : memref<1x16x128xf32, #tpu.memory_space<vmem>>, vector<1x16x128xf32>,
    } else {
    }
    %9 = arith.extui %5 : i1 to i32
    %c0_i32_3 = arith.constant 0 : i32
    %10 = arith.cmpi ne, %9, %c0_i32_3 : i32
    scf.if %10 {
      %c3072_i32 = arith.constant 3072 : i32
      %11 = arith.muli %4, %c3072_i32 : i32
      %c0 = arith.constant 0 : index
      %c0_4 = arith.constant 0 : index
      %c0_5 = arith.constant 0 : index
      %12 = vector.load %arg5[%c0, %c0_4, %c0_5] : memref<1x16x128xf32, #tpu.memory_space<vmem>>, vector<1x16x128xf32>
      %13 = vector.shape_cast %12 : vector<1x16x128xf32> to vector<16x128xf32>
      %c0_6 = arith.constant 0 : index
      %c0_7 = arith.constant 0 : index
      %c0_8 = arith.constant 0 : index
      %14 = vector.load %arg6[%c0_6, %c0_7, %c0_8] : memref<1x16x128xf32, #tpu.memory_space<vmem>>, vector<1x16x128xf32>
      %15 = vector.shape_cast %14 : vector<1x16x128xf32> to vector<16x128xf32>
      %c0_9 = arith.constant 0 : index
      %c0_10 = arith.constant 0 : index
      %16 = vector.load %arg3[%c0_9, %c0_10] : memref<16x3072xf32, #tpu.memory_space<vmem>>, vector<16x128xf32>
      %c0_11 = arith.constant 0 : index
      %c0_12 = arith.constant 0 : index
      %17 = vector.load %arg4[%c0_11, %c0_12] : memref<16x3072xf32, #tpu.memory_space<vmem>>, vector<16x128xf32>
      %18 = arith.subf %17, %16 : vector<16x128xf32>
      %19 = arith.mulf %17, %17 : vector<16x128xf32>
      %20 = tpu.iota {dimensions = array<i32: 1>} : vector<16x128xi32>
      %c0_i32_13 = arith.constant 0 : i32
      %21 = arith.addi %11, %c0_i32_13 : i32
      %22 = vector.broadcast %21 : i32 to vector<16x128xi32>
      %23 = arith.addi %20, %22 : vector<16x128xi32>
      %c3000_i32 = arith.constant 3000 : i32
      %24 = vector.broadcast %c3000_i32 : i32 to vector<16x128xi32>
      %25 = arith.cmpi slt, %23, %24 : vector<16x128xi32>
      %cst = arith.constant 0.000000e+00 : f32
      %26 = vector.broadcast %cst : f32 to vector<16x128xf32>
      %27 = arith.select %25, %18, %26 : vector<16x128xi1>, vector<16x128xf32>
      %cst_14 = arith.constant 0.000000e+00 : f32
      %28 = vector.broadcast %cst_14 : f32 to vector<16x128xf32>
      %29 = arith.select %25, %19, %28 : vector<16x128xi1>, vector<16x128xf32>
      %30 = arith.addf %13, %27 : vector<16x128xf32>
      %31 = arith.addf %15, %29 : vector<16x128xf32>
      %c0_15 = arith.constant 0 : index
      %c128 = arith.constant 128 : index
      %32 = vector.load %arg3[%c0_15, %c128] : memref<16x3072xf32, #tpu.memory_space<vmem>>, vector<16x128xf32>
      %c0_16 = arith.constant 0 : index
      %c128_17 = arith.constant 128 : index
      %33 = vector.load %arg4[%c0_16, %c128_17] : memref<16x3072xf32, #tpu.memory_space<vmem>>, vector<16x128xf32>
      %34 = arith.subf %33, %32 : vector<16x128xf32>
      %35 = arith.mulf %33, %33 : vector<16x128xf32>
      %36 = tpu.iota {dimensions = array<i32: 1>} : vector<16x128xi32>
      %c128_i32 = arith.constant 128 : i32
      %37 = arith.addi %11, %c128_i32 : i32
      %38 = vector.broadcast %37 : i32 to vector<16x128xi32>
      %39 = arith.addi %36, %38 : vector<16x128xi32>
      %c3000_i32_18 = arith.constant 3000 : i32
      %40 = vector.broadcast %c3000_i32_18 : i32 to vector<16x128xi32>
      %41 = arith.cmpi slt, %39, %40 : vector<16x128xi32>
      %cst_19 = arith.constant 0.000000e+00 : f32
      %42 = vector.broadcast %cst_19 : f32 to vector<16x128xf32>
      %43 = arith.select %41, %34, %42 : vector<16x128xi1>, vector<16x128xf32>
      %cst_20 = arith.constant 0.000000e+00 : f32
      %44 = vector.broadcast %cst_20 : f32 to vector<16x128xf32>
      %45 = arith.select %41, %35, %44 : vector<16x128xi1>, vector<16x128xf32>
      %46 = arith.addf %30, %43 : vector<16x128xf32>
      %47 = arith.addf %31, %45 : vector<16x128xf32>
      %c0_21 = arith.constant 0 : index
      %c256 = arith.constant 256 : index
      %48 = vector.load %arg3[%c0_21, %c256] : memref<16x3072xf32, #tpu.memory_space<vmem>>, vector<16x128xf32>
      %c0_22 = arith.constant 0 : index
      %c256_23 = arith.constant 256 : index
      %49 = vector.load %arg4[%c0_22, %c256_23] : memref<16x3072xf32, #tpu.memory_space<vmem>>, vector<16x128xf32>
      %50 = arith.subf %49, %48 : vector<16x128xf32>
      %51 = arith.mulf %49, %49 : vector<16x128xf32>
      %52 = tpu.iota {dimensions = array<i32: 1>} : vector<16x128xi32>
      %c256_i32 = arith.constant 256 : i32
      %53 = arith.addi %11, %c256_i32 : i32
      %54 = vector.broadcast %53 : i32 to vector<16x128xi32>
      %55 = arith.addi %52, %54 : vector<16x128xi32>
      %c3000_i32_24 = arith.constant 3000 : i32
      %56 = vector.broadcast %c3000_i32_24 : i32 to vector<16x128xi32>
      %57 = arith.cmpi slt, %55, %56 : vector<16x128xi32>
      %cst_25 = arith.constant 0.000000e+00 : f32
      %58 = vector.broadcast %cst_25 : f32 to vector<16x128xf32>
      %59 = arith.select %57, %50, %58 : vector<16x128xi1>, vector<16x128xf32>
      %cst_26 = arith.constant 0.000000e+00 : f32
      %60 = vector.broadcast %cst_26 : f32 to vector<16x128xf32>
      %61 = arith.select %57, %51, %60 : vector<16x128xi1>, vector<16x128xf32>
      %62 = arith.addf %46, %59 : vector<16x128xf32>
      %63 = arith.addf %47, %61 : vector<16x128xf32>
      %c0_27 = arith.constant 0 : index
      %c384 = arith.constant 384 : index
      %64 = vector.load %arg3[%c0_27, %c384] : memref<16x3072xf32, #tpu.memory_space<vmem>>, vector<16x128xf32>
      %c0_28 = arith.constant 0 : index
      %c384_29 = arith.constant 384 : index
      %65 = vector.load %arg4[%c0_28, %c384_29] : memref<16x3072xf32, #tpu.memory_space<vmem>>, vector<16x128xf32>
      %66 = arith.subf %65, %64 : vector<16x128xf32>
      %67 = arith.mulf %65, %65 : vector<16x128xf32>
      %68 = tpu.iota {dimensions = array<i32: 1>} : vector<16x128xi32>
      %c384_i32 = arith.constant 384 : i32
      %69 = arith.addi %11, %c384_i32 : i32
      %70 = vector.broadcast %69 : i32 to vector<16x128xi32>
      %71 = arith.addi %68, %70 : vector<16x128xi32>
      %c3000_i32_30 = arith.constant 3000 : i32
      %72 = vector.broadcast %c3000_i32_30 : i32 to vector<16x128xi32>
      %73 = arith.cmpi slt, %71, %72 : vector<16x128xi32>
      %cst_31 = arith.constant 0.000000e+00 : f32
      %74 = vector.broadcast %cst_31 : f32 to vector<16x128xf32>
      %75 = arith.select %73, %66, %74 : vector<16x128xi1>, vector<16x128xf32>
      %cst_32 = arith.constant 0.000000e+00 : f32
      %76 = vector.broadcast %cst_32 : f32 to vector<16x128xf32>
      %77 = arith.select %73, %67, %76 : vector<16x128xi1>, vector<16x128xf32>
      %78 = arith.addf %62, %75 : vector<16x128xf32>
      %79 = arith.addf %63, %77 : vector<16x128xf32>
      %c0_33 = arith.constant 0 : index
      %c512 = arith.constant 512 : index
      %80 = vector.load %arg3[%c0_33, %c512] : memref<16x3072xf32, #tpu.memory_space<vmem>>, vector<16x128xf32>
      %c0_34 = arith.constant 0 : index
      %c512_35 = arith.constant 512 : index
      %81 = vector.load %arg4[%c0_34, %c512_35] : memref<16x3072xf32, #tpu.memory_space<vmem>>, vector<16x128xf32>
      %82 = arith.subf %81, %80 : vector<16x128xf32>
      %83 = arith.mulf %81, %81 : vector<16x128xf32>
      %84 = tpu.iota {dimensions = array<i32: 1>} : vector<16x128xi32>
      %c512_i32 = arith.constant 512 : i32
      %85 = arith.addi %11, %c512_i32 : i32
      %86 = vector.broadcast %85 : i32 to vector<16x128xi32>
      %87 = arith.addi %84, %86 : vector<16x128xi32>
      %c3000_i32_36 = arith.constant 3000 : i32
      %88 = vector.broadcast %c3000_i32_36 : i32 to vector<16x128xi32>
      %89 = arith.cmpi slt, %87, %88 : vector<16x128xi32>
      %cst_37 = arith.constant 0.000000e+00 : f32
      %90 = vector.broadcast %cst_37 : f32 to vector<16x128xf32>
      %91 = arith.select %89, %82, %90 : vector<16x128xi1>, vector<16x128xf32>
      %cst_38 = arith.constant 0.000000e+00 : f32
      %92 = vector.broadcast %cst_38 : f32 to vector<16x128xf32>
      %93 = arith.select %89, %83, %92 : vector<16x128xi1>, vector<16x128xf32>
      %94 = arith.addf %78, %91 : vector<16x128xf32>
      %95 = arith.addf %79, %93 : vector<16x128xf32>
      %c0_39 = arith.constant 0 : index
      %c640 = arith.constant 640 : index
      %96 = vector.load %arg3[%c0_39, %c640] : memref<16x3072xf32, #tpu.memory_space<vmem>>, vector<16x128xf32>
      %c0_40 = arith.constant 0 : index
      %c640_41 = arith.constant 640 : index
      %97 = vector.load %arg4[%c0_40, %c640_41] : memref<16x3072xf32, #tpu.memory_space<vmem>>, vector<16x128xf32>
      %98 = arith.subf %97, %96 : vector<16x128xf32>
      %99 = arith.mulf %97, %97 : vector<16x128xf32>
      %100 = tpu.iota {dimensions = array<i32: 1>} : vector<16x128xi32>
      %c640_i32 = arith.constant 640 : i32
      %101 = arith.addi %11, %c640_i32 : i32
      %102 = vector.broadcast %101 : i32 to vector<16x128xi32>
      %103 = arith.addi %100, %102 : vector<16x128xi32>
      %c3000_i32_42 = arith.constant 3000 : i32
      %104 = vector.broadcast %c3000_i32_42 : i32 to vector<16x128xi32>
      %105 = arith.cmpi slt, %103, %104 : vector<16x128xi32>
      %cst_43 = arith.constant 0.000000e+00 : f32
      %106 = vector.broadcast %cst_43 : f32 to vector<16x128xf32>
      %107 = arith.select %105, %98, %106 : vector<16x128xi1>, vector<16x128xf32>
      %cst_44 = arith.constant 0.000000e+00 : f32
      %108 = vector.broadcast %cst_44 : f32 to vector<16x128xf32>
      %109 = arith.select %105, %99, %108 : vector<16x128xi1>, vector<16x128xf32>
      %110 = arith.addf %94, %107 : vector<16x128xf32>
      %111 = arith.addf %95, %109 : vector<16x128xf32>
      %c0_45 = arith.constant 0 : index
      %c768 = arith.constant 768 : index
      %112 = vector.load %arg3[%c0_45, %c768] : memref<16x3072xf32, #tpu.memory_space<vmem>>, vector<16x128xf32>
      %c0_46 = arith.constant 0 : index
      %c768_47 = arith.constant 768 : index
      %113 = vector.load %arg4[%c0_46, %c768_47] : memref<16x3072xf32, #tpu.memory_space<vmem>>, vector<16x128xf32>
      %114 = arith.subf %113, %112 : vector<16x128xf32>
      %115 = arith.mulf %113, %113 : vector<16x128xf32>
      %116 = tpu.iota {dimensions = array<i32: 1>} : vector<16x128xi32>
      %c768_i32 = arith.constant 768 : i32
      %117 = arith.addi %11, %c768_i32 : i32
      %118 = vector.broadcast %117 : i32 to vector<16x128xi32>
      %119 = arith.addi %116, %118 : vector<16x128xi32>
      %c3000_i32_48 = arith.constant 3000 : i32
      %120 = vector.broadcast %c3000_i32_48 : i32 to vector<16x128xi32>
      %121 = arith.cmpi slt, %119, %120 : vector<16x128xi32>
      %cst_49 = arith.constant 0.000000e+00 : f32
      %122 = vector.broadcast %cst_49 : f32 to vector<16x128xf32>
      %123 = arith.select %121, %114, %122 : vector<16x128xi1>, vector<16x128xf32>
      %cst_50 = arith.constant 0.000000e+00 : f32
      %124 = vector.broadcast %cst_50 : f32 to vector<16x128xf32>
      %125 = arith.select %121, %115, %124 : vector<16x128xi1>, vector<16x128xf32>
      %126 = arith.addf %110, %123 : vector<16x128xf32>
      %127 = arith.addf %111, %125 : vector<16x128xf32>
      %c0_51 = arith.constant 0 : index
      %c896 = arith.constant 896 : index
      %128 = vector.load %arg3[%c0_51, %c896] : memref<16x3072xf32, #tpu.memory_space<vmem>>, vector<16x128xf32>
      %c0_52 = arith.constant 0 : index
      %c896_53 = arith.constant 896 : index
      %129 = vector.load %arg4[%c0_52, %c896_53] : memref<16x3072xf32, #tpu.memory_space<vmem>>, vector<16x128xf32>
      %130 = arith.subf %129, %128 : vector<16x128xf32>
      %131 = arith.mulf %129, %129 : vector<16x128xf32>
      %132 = tpu.iota {dimensions = array<i32: 1>} : vector<16x128xi32>
      %c896_i32 = arith.constant 896 : i32
      %133 = arith.addi %11, %c896_i32 : i32
      %134 = vector.broadcast %133 : i32 to vector<16x128xi32>
      %135 = arith.addi %132, %134 : vector<16x128xi32>
      %c3000_i32_54 = arith.constant 3000 : i32
      %136 = vector.broadcast %c3000_i32_54 : i32 to vector<16x128xi32>
      %137 = arith.cmpi slt, %135, %136 : vector<16x128xi32>
      %cst_55 = arith.constant 0.000000e+00 : f32
      %138 = vector.broadcast %cst_55 : f32 to vector<16x128xf32>
      %139 = arith.select %137, %130, %138 : vector<16x128xi1>, vector<16x128xf32>
      %cst_56 = arith.constant 0.000000e+00 : f32
      %140 = vector.broadcast %cst_56 : f32 to vector<16x128xf32>
      %141 = arith.select %137, %131, %140 : vector<16x128xi1>, vector<16x128xf32>
      %142 = arith.addf %126, %139 : vector<16x128xf32>
      %143 = arith.addf %127, %141 : vector<16x128xf32>
      %c0_57 = arith.constant 0 : index
      %c1024 = arith.constant 1024 : index
      %144 = vector.load %arg3[%c0_57, %c1024] : memref<16x3072xf32, #tpu.memory_space<vmem>>, vector<16x128xf32>
      %c0_58 = arith.constant 0 : index
      %c1024_59 = arith.constant 1024 : index
      %145 = vector.load %arg4[%c0_58, %c1024_59] : memref<16x3072xf32, #tpu.memory_space<vmem>>, vector<16x128xf32>
      %146 = arith.subf %145, %144 : vector<16x128xf32>
      %147 = arith.mulf %145, %145 : vector<16x128xf32>
      %148 = tpu.iota {dimensions = array<i32: 1>} : vector<16x128xi32>
      %c1024_i32 = arith.constant 1024 : i32
      %149 = arith.addi %11, %c1024_i32 : i32
      %150 = vector.broadcast %149 : i32 to vector<16x128xi32>
      %151 = arith.addi %148, %150 : vector<16x128xi32>
      %c3000_i32_60 = arith.constant 3000 : i32
      %152 = vector.broadcast %c3000_i32_60 : i32 to vector<16x128xi32>
      %153 = arith.cmpi slt, %151, %152 : vector<16x128xi32>
      %cst_61 = arith.constant 0.000000e+00 : f32
      %154 = vector.broadcast %cst_61 : f32 to vector<16x128xf32>
      %155 = arith.select %153, %146, %154 : vector<16x128xi1>, vector<16x128xf32>
      %cst_62 = arith.constant 0.000000e+00 : f32
      %156 = vector.broadcast %cst_62 : f32 to vector<16x128xf32>
      %157 = arith.select %153, %147, %156 : vector<16x128xi1>, vector<16x128xf32>
      %158 = arith.addf %142, %155 : vector<16x128xf32>
      %159 = arith.addf %143, %157 : vector<16x128xf32>
      %c0_63 = arith.constant 0 : index
      %c1152 = arith.constant 1152 : index
      %160 = vector.load %arg3[%c0_63, %c1152] : memref<16x3072xf32, #tpu.memory_space<vmem>>, vector<16x128xf32>
      %c0_64 = arith.constant 0 : index
      %c1152_65 = arith.constant 1152 : index
      %161 = vector.load %arg4[%c0_64, %c1152_65] : memref<16x3072xf32, #tpu.memory_space<vmem>>, vector<16x128xf32>
      %162 = arith.subf %161, %160 : vector<16x128xf32>
      %163 = arith.mulf %161, %161 : vector<16x128xf32>
      %164 = tpu.iota {dimensions = array<i32: 1>} : vector<16x128xi32>
      %c1152_i32 = arith.constant 1152 : i32
      %165 = arith.addi %11, %c1152_i32 : i32
      %166 = vector.broadcast %165 : i32 to vector<16x128xi32>
      %167 = arith.addi %164, %166 : vector<16x128xi32>
      %c3000_i32_66 = arith.constant 3000 : i32
      %168 = vector.broadcast %c3000_i32_66 : i32 to vector<16x128xi32>
      %169 = arith.cmpi slt, %167, %168 : vector<16x128xi32>
      %cst_67 = arith.constant 0.000000e+00 : f32
      %170 = vector.broadcast %cst_67 : f32 to vector<16x128xf32>
      %171 = arith.select %169, %162, %170 : vector<16x128xi1>, vector<16x128xf32>
      %cst_68 = arith.constant 0.000000e+00 : f32
      %172 = vector.broadcast %cst_68 : f32 to vector<16x128xf32>
      %173 = arith.select %169, %163, %172 : vector<16x128xi1>, vector<16x128xf32>
      %174 = arith.addf %158, %171 : vector<16x128xf32>
      %175 = arith.addf %159, %173 : vector<16x128xf32>
      %c0_69 = arith.constant 0 : index
      %c1280 = arith.constant 1280 : index
      %176 = vector.load %arg3[%c0_69, %c1280] : memref<16x3072xf32, #tpu.memory_space<vmem>>, vector<16x128xf32>
      %c0_70 = arith.constant 0 : index
      %c1280_71 = arith.constant 1280 : index
      %177 = vector.load %arg4[%c0_70, %c1280_71] : memref<16x3072xf32, #tpu.memory_space<vmem>>, vector<16x128xf32>
      %178 = arith.subf %177, %176 : vector<16x128xf32>
      %179 = arith.mulf %177, %177 : vector<16x128xf32>
      %180 = tpu.iota {dimensions = array<i32: 1>} : vector<16x128xi32>
      %c1280_i32 = arith.constant 1280 : i32
      %181 = arith.addi %11, %c1280_i32 : i32
      %182 = vector.broadcast %181 : i32 to vector<16x128xi32>
      %183 = arith.addi %180, %182 : vector<16x128xi32>
      %c3000_i32_72 = arith.constant 3000 : i32
      %184 = vector.broadcast %c3000_i32_72 : i32 to vector<16x128xi32>
      %185 = arith.cmpi slt, %183, %184 : vector<16x128xi32>
      %cst_73 = arith.constant 0.000000e+00 : f32
      %186 = vector.broadcast %cst_73 : f32 to vector<16x128xf32>
      %187 = arith.select %185, %178, %186 : vector<16x128xi1>, vector<16x128xf32>
      %cst_74 = arith.constant 0.000000e+00 : f32
      %188 = vector.broadcast %cst_74 : f32 to vector<16x128xf32>
      %189 = arith.select %185, %179, %188 : vector<16x128xi1>, vector<16x128xf32>
      %190 = arith.addf %174, %187 : vector<16x128xf32>
      %191 = arith.addf %175, %189 : vector<16x128xf32>
      %c0_75 = arith.constant 0 : index
      %c1408 = arith.constant 1408 : index
      %192 = vector.load %arg3[%c0_75, %c1408] : memref<16x3072xf32, #tpu.memory_space<vmem>>, vector<16x128xf32>
      %c0_76 = arith.constant 0 : index
      %c1408_77 = arith.constant 1408 : index
      %193 = vector.load %arg4[%c0_76, %c1408_77] : memref<16x3072xf32, #tpu.memory_space<vmem>>, vector<16x128xf32>
      %194 = arith.subf %193, %192 : vector<16x128xf32>
      %195 = arith.mulf %193, %193 : vector<16x128xf32>
      %196 = tpu.iota {dimensions = array<i32: 1>} : vector<16x128xi32>
      %c1408_i32 = arith.constant 1408 : i32
      %197 = arith.addi %11, %c1408_i32 : i32
      %198 = vector.broadcast %197 : i32 to vector<16x128xi32>
      %199 = arith.addi %196, %198 : vector<16x128xi32>
      %c3000_i32_78 = arith.constant 3000 : i32
      %200 = vector.broadcast %c3000_i32_78 : i32 to vector<16x128xi32>
      %201 = arith.cmpi slt, %199, %200 : vector<16x128xi32>
      %cst_79 = arith.constant 0.000000e+00 : f32
      %202 = vector.broadcast %cst_79 : f32 to vector<16x128xf32>
      %203 = arith.select %201, %194, %202 : vector<16x128xi1>, vector<16x128xf32>
      %cst_80 = arith.constant 0.000000e+00 : f32
      %204 = vector.broadcast %cst_80 : f32 to vector<16x128xf32>
      %205 = arith.select %201, %195, %204 : vector<16x128xi1>, vector<16x128xf32>
      %206 = arith.addf %190, %203 : vector<16x128xf32>
      %207 = arith.addf %191, %205 : vector<16x128xf32>
      %c0_81 = arith.constant 0 : index
      %c1536 = arith.constant 1536 : index
      %208 = vector.load %arg3[%c0_81, %c1536] : memref<16x3072xf32, #tpu.memory_space<vmem>>, vector<16x128xf32>
      %c0_82 = arith.constant 0 : index
      %c1536_83 = arith.constant 1536 : index
      %209 = vector.load %arg4[%c0_82, %c1536_83] : memref<16x3072xf32, #tpu.memory_space<vmem>>, vector<16x128xf32>
      %210 = arith.subf %209, %208 : vector<16x128xf32>
      %211 = arith.mulf %209, %209 : vector<16x128xf32>
      %212 = tpu.iota {dimensions = array<i32: 1>} : vector<16x128xi32>
      %c1536_i32 = arith.constant 1536 : i32
      %213 = arith.addi %11, %c1536_i32 : i32
      %214 = vector.broadcast %213 : i32 to vector<16x128xi32>
      %215 = arith.addi %212, %214 : vector<16x128xi32>
      %c3000_i32_84 = arith.constant 3000 : i32
      %216 = vector.broadcast %c3000_i32_84 : i32 to vector<16x128xi32>
      %217 = arith.cmpi slt, %215, %216 : vector<16x128xi32>
      %cst_85 = arith.constant 0.000000e+00 : f32
      %218 = vector.broadcast %cst_85 : f32 to vector<16x128xf32>
      %219 = arith.select %217, %210, %218 : vector<16x128xi1>, vector<16x128xf32>
      %cst_86 = arith.constant 0.000000e+00 : f32
      %220 = vector.broadcast %cst_86 : f32 to vector<16x128xf32>
      %221 = arith.select %217, %211, %220 : vector<16x128xi1>, vector<16x128xf32>
      %222 = arith.addf %206, %219 : vector<16x128xf32>
      %223 = arith.addf %207, %221 : vector<16x128xf32>
      %c0_87 = arith.constant 0 : index
      %c1664 = arith.constant 1664 : index
      %224 = vector.load %arg3[%c0_87, %c1664] : memref<16x3072xf32, #tpu.memory_space<vmem>>, vector<16x128xf32>
      %c0_88 = arith.constant 0 : index
      %c1664_89 = arith.constant 1664 : index
      %225 = vector.load %arg4[%c0_88, %c1664_89] : memref<16x3072xf32, #tpu.memory_space<vmem>>, vector<16x128xf32>
      %226 = arith.subf %225, %224 : vector<16x128xf32>
      %227 = arith.mulf %225, %225 : vector<16x128xf32>
      %228 = tpu.iota {dimensions = array<i32: 1>} : vector<16x128xi32>
      %c1664_i32 = arith.constant 1664 : i32
      %229 = arith.addi %11, %c1664_i32 : i32
      %230 = vector.broadcast %229 : i32 to vector<16x128xi32>
      %231 = arith.addi %228, %230 : vector<16x128xi32>
      %c3000_i32_90 = arith.constant 3000 : i32
      %232 = vector.broadcast %c3000_i32_90 : i32 to vector<16x128xi32>
      %233 = arith.cmpi slt, %231, %232 : vector<16x128xi32>
      %cst_91 = arith.constant 0.000000e+00 : f32
      %234 = vector.broadcast %cst_91 : f32 to vector<16x128xf32>
      %235 = arith.select %233, %226, %234 : vector<16x128xi1>, vector<16x128xf32>
      %cst_92 = arith.constant 0.000000e+00 : f32
      %236 = vector.broadcast %cst_92 : f32 to vector<16x128xf32>
      %237 = arith.select %233, %227, %236 : vector<16x128xi1>, vector<16x128xf32>
      %238 = arith.addf %222, %235 : vector<16x128xf32>
      %239 = arith.addf %223, %237 : vector<16x128xf32>
      %c0_93 = arith.constant 0 : index
      %c1792 = arith.constant 1792 : index
      %240 = vector.load %arg3[%c0_93, %c1792] : memref<16x3072xf32, #tpu.memory_space<vmem>>, vector<16x128xf32>
      %c0_94 = arith.constant 0 : index
      %c1792_95 = arith.constant 1792 : index
      %241 = vector.load %arg4[%c0_94, %c1792_95] : memref<16x3072xf32, #tpu.memory_space<vmem>>, vector<16x128xf32>
      %242 = arith.subf %241, %240 : vector<16x128xf32>
      %243 = arith.mulf %241, %241 : vector<16x128xf32>
      %244 = tpu.iota {dimensions = array<i32: 1>} : vector<16x128xi32>
      %c1792_i32 = arith.constant 1792 : i32
      %245 = arith.addi %11, %c1792_i32 : i32
      %246 = vector.broadcast %245 : i32 to vector<16x128xi32>
      %247 = arith.addi %244, %246 : vector<16x128xi32>
      %c3000_i32_96 = arith.constant 3000 : i32
      %248 = vector.broadcast %c3000_i32_96 : i32 to vector<16x128xi32>
      %249 = arith.cmpi slt, %247, %248 : vector<16x128xi32>
      %cst_97 = arith.constant 0.000000e+00 : f32
      %250 = vector.broadcast %cst_97 : f32 to vector<16x128xf32>
      %251 = arith.select %249, %242, %250 : vector<16x128xi1>, vector<16x128xf32>
      %cst_98 = arith.constant 0.000000e+00 : f32
      %252 = vector.broadcast %cst_98 : f32 to vector<16x128xf32>
      %253 = arith.select %249, %243, %252 : vector<16x128xi1>, vector<16x128xf32>
      %254 = arith.addf %238, %251 : vector<16x128xf32>
      %255 = arith.addf %239, %253 : vector<16x128xf32>
      %c0_99 = arith.constant 0 : index
      %c1920 = arith.constant 1920 : index
      %256 = vector.load %arg3[%c0_99, %c1920] : memref<16x3072xf32, #tpu.memory_space<vmem>>, vector<16x128xf32>
      %c0_100 = arith.constant 0 : index
      %c1920_101 = arith.constant 1920 : index
      %257 = vector.load %arg4[%c0_100, %c1920_101] : memref<16x3072xf32, #tpu.memory_space<vmem>>, vector<16x128xf32>
      %258 = arith.subf %257, %256 : vector<16x128xf32>
      %259 = arith.mulf %257, %257 : vector<16x128xf32>
      %260 = tpu.iota {dimensions = array<i32: 1>} : vector<16x128xi32>
      %c1920_i32 = arith.constant 1920 : i32
      %261 = arith.addi %11, %c1920_i32 : i32
      %262 = vector.broadcast %261 : i32 to vector<16x128xi32>
      %263 = arith.addi %260, %262 : vector<16x128xi32>
      %c3000_i32_102 = arith.constant 3000 : i32
      %264 = vector.broadcast %c3000_i32_102 : i32 to vector<16x128xi32>
      %265 = arith.cmpi slt, %263, %264 : vector<16x128xi32>
      %cst_103 = arith.constant 0.000000e+00 : f32
      %266 = vector.broadcast %cst_103 : f32 to vector<16x128xf32>
      %267 = arith.select %265, %258, %266 : vector<16x128xi1>, vector<16x128xf32>
      %cst_104 = arith.constant 0.000000e+00 : f32
      %268 = vector.broadcast %cst_104 : f32 to vector<16x128xf32>
      %269 = arith.select %265, %259, %268 : vector<16x128xi1>, vector<16x128xf32>
      %270 = arith.addf %254, %267 : vector<16x128xf32>
      %271 = arith.addf %255, %269 : vector<16x128xf32>
      %c0_105 = arith.constant 0 : index
      %c2048 = arith.constant 2048 : index
      %272 = vector.load %arg3[%c0_105, %c2048] : memref<16x3072xf32, #tpu.memory_space<vmem>>, vector<16x128xf32>
      %c0_106 = arith.constant 0 : index
      %c2048_107 = arith.constant 2048 : index
      %273 = vector.load %arg4[%c0_106, %c2048_107] : memref<16x3072xf32, #tpu.memory_space<vmem>>, vector<16x128xf32>
      %274 = arith.subf %273, %272 : vector<16x128xf32>
      %275 = arith.mulf %273, %273 : vector<16x128xf32>
      %276 = tpu.iota {dimensions = array<i32: 1>} : vector<16x128xi32>
      %c2048_i32 = arith.constant 2048 : i32
      %277 = arith.addi %11, %c2048_i32 : i32
      %278 = vector.broadcast %277 : i32 to vector<16x128xi32>
      %279 = arith.addi %276, %278 : vector<16x128xi32>
      %c3000_i32_108 = arith.constant 3000 : i32
      %280 = vector.broadcast %c3000_i32_108 : i32 to vector<16x128xi32>
      %281 = arith.cmpi slt, %279, %280 : vector<16x128xi32>
      %cst_109 = arith.constant 0.000000e+00 : f32
      %282 = vector.broadcast %cst_109 : f32 to vector<16x128xf32>
      %283 = arith.select %281, %274, %282 : vector<16x128xi1>, vector<16x128xf32>
      %cst_110 = arith.constant 0.000000e+00 : f32
      %284 = vector.broadcast %cst_110 : f32 to vector<16x128xf32>
      %285 = arith.select %281, %275, %284 : vector<16x128xi1>, vector<16x128xf32>
      %286 = arith.addf %270, %283 : vector<16x128xf32>
      %287 = arith.addf %271, %285 : vector<16x128xf32>
      %c0_111 = arith.constant 0 : index
      %c2176 = arith.constant 2176 : index
      %288 = vector.load %arg3[%c0_111, %c2176] : memref<16x3072xf32, #tpu.memory_space<vmem>>, vector<16x128xf32>
      %c0_112 = arith.constant 0 : index
      %c2176_113 = arith.constant 2176 : index
      %289 = vector.load %arg4[%c0_112, %c2176_113] : memref<16x3072xf32, #tpu.memory_space<vmem>>, vector<16x128xf32>
      %290 = arith.subf %289, %288 : vector<16x128xf32>
      %291 = arith.mulf %289, %289 : vector<16x128xf32>
      %292 = tpu.iota {dimensions = array<i32: 1>} : vector<16x128xi32>
      %c2176_i32 = arith.constant 2176 : i32
      %293 = arith.addi %11, %c2176_i32 : i32
      %294 = vector.broadcast %293 : i32 to vector<16x128xi32>
      %295 = arith.addi %292, %294 : vector<16x128xi32>
      %c3000_i32_114 = arith.constant 3000 : i32
      %296 = vector.broadcast %c3000_i32_114 : i32 to vector<16x128xi32>
      %297 = arith.cmpi slt, %295, %296 : vector<16x128xi32>
      %cst_115 = arith.constant 0.000000e+00 : f32
      %298 = vector.broadcast %cst_115 : f32 to vector<16x128xf32>
      %299 = arith.select %297, %290, %298 : vector<16x128xi1>, vector<16x128xf32>
      %cst_116 = arith.constant 0.000000e+00 : f32
      %300 = vector.broadcast %cst_116 : f32 to vector<16x128xf32>
      %301 = arith.select %297, %291, %300 : vector<16x128xi1>, vector<16x128xf32>
      %302 = arith.addf %286, %299 : vector<16x128xf32>
      %303 = arith.addf %287, %301 : vector<16x128xf32>
      %c0_117 = arith.constant 0 : index
      %c2304 = arith.constant 2304 : index
      %304 = vector.load %arg3[%c0_117, %c2304] : memref<16x3072xf32, #tpu.memory_space<vmem>>, vector<16x128xf32>
      %c0_118 = arith.constant 0 : index
      %c2304_119 = arith.constant 2304 : index
      %305 = vector.load %arg4[%c0_118, %c2304_119] : memref<16x3072xf32, #tpu.memory_space<vmem>>, vector<16x128xf32>
      %306 = arith.subf %305, %304 : vector<16x128xf32>
      %307 = arith.mulf %305, %305 : vector<16x128xf32>
      %308 = tpu.iota {dimensions = array<i32: 1>} : vector<16x128xi32>
      %c2304_i32 = arith.constant 2304 : i32
      %309 = arith.addi %11, %c2304_i32 : i32
      %310 = vector.broadcast %309 : i32 to vector<16x128xi32>
      %311 = arith.addi %308, %310 : vector<16x128xi32>
      %c3000_i32_120 = arith.constant 3000 : i32
      %312 = vector.broadcast %c3000_i32_120 : i32 to vector<16x128xi32>
      %313 = arith.cmpi slt, %311, %312 : vector<16x128xi32>
      %cst_121 = arith.constant 0.000000e+00 : f32
      %314 = vector.broadcast %cst_121 : f32 to vector<16x128xf32>
      %315 = arith.select %313, %306, %314 : vector<16x128xi1>, vector<16x128xf32>
      %cst_122 = arith.constant 0.000000e+00 : f32
      %316 = vector.broadcast %cst_122 : f32 to vector<16x128xf32>
      %317 = arith.select %313, %307, %316 : vector<16x128xi1>, vector<16x128xf32>
      %318 = arith.addf %302, %315 : vector<16x128xf32>
      %319 = arith.addf %303, %317 : vector<16x128xf32>
      %c0_123 = arith.constant 0 : index
      %c2432 = arith.constant 2432 : index
      %320 = vector.load %arg3[%c0_123, %c2432] : memref<16x3072xf32, #tpu.memory_space<vmem>>, vector<16x128xf32>
      %c0_124 = arith.constant 0 : index
      %c2432_125 = arith.constant 2432 : index
      %321 = vector.load %arg4[%c0_124, %c2432_125] : memref<16x3072xf32, #tpu.memory_space<vmem>>, vector<16x128xf32>
      %322 = arith.subf %321, %320 : vector<16x128xf32>
      %323 = arith.mulf %321, %321 : vector<16x128xf32>
      %324 = tpu.iota {dimensions = array<i32: 1>} : vector<16x128xi32>
      %c2432_i32 = arith.constant 2432 : i32
      %325 = arith.addi %11, %c2432_i32 : i32
      %326 = vector.broadcast %325 : i32 to vector<16x128xi32>
      %327 = arith.addi %324, %326 : vector<16x128xi32>
      %c3000_i32_126 = arith.constant 3000 : i32
      %328 = vector.broadcast %c3000_i32_126 : i32 to vector<16x128xi32>
      %329 = arith.cmpi slt, %327, %328 : vector<16x128xi32>
      %cst_127 = arith.constant 0.000000e+00 : f32
      %330 = vector.broadcast %cst_127 : f32 to vector<16x128xf32>
      %331 = arith.select %329, %322, %330 : vector<16x128xi1>, vector<16x128xf32>
      %cst_128 = arith.constant 0.000000e+00 : f32
      %332 = vector.broadcast %cst_128 : f32 to vector<16x128xf32>
      %333 = arith.select %329, %323, %332 : vector<16x128xi1>, vector<16x128xf32>
      %334 = arith.addf %318, %331 : vector<16x128xf32>
      %335 = arith.addf %319, %333 : vector<16x128xf32>
      %c0_129 = arith.constant 0 : index
      %c2560 = arith.constant 2560 : index
      %336 = vector.load %arg3[%c0_129, %c2560] : memref<16x3072xf32, #tpu.memory_space<vmem>>, vector<16x128xf32>
      %c0_130 = arith.constant 0 : index
      %c2560_131 = arith.constant 2560 : index
      %337 = vector.load %arg4[%c0_130, %c2560_131] : memref<16x3072xf32, #tpu.memory_space<vmem>>, vector<16x128xf32>
      %338 = arith.subf %337, %336 : vector<16x128xf32>
      %339 = arith.mulf %337, %337 : vector<16x128xf32>
      %340 = tpu.iota {dimensions = array<i32: 1>} : vector<16x128xi32>
      %c2560_i32 = arith.constant 2560 : i32
      %341 = arith.addi %11, %c2560_i32 : i32
      %342 = vector.broadcast %341 : i32 to vector<16x128xi32>
      %343 = arith.addi %340, %342 : vector<16x128xi32>
      %c3000_i32_132 = arith.constant 3000 : i32
      %344 = vector.broadcast %c3000_i32_132 : i32 to vector<16x128xi32>
      %345 = arith.cmpi slt, %343, %344 : vector<16x128xi32>
      %cst_133 = arith.constant 0.000000e+00 : f32
      %346 = vector.broadcast %cst_133 : f32 to vector<16x128xf32>
      %347 = arith.select %345, %338, %346 : vector<16x128xi1>, vector<16x128xf32>
      %cst_134 = arith.constant 0.000000e+00 : f32
      %348 = vector.broadcast %cst_134 : f32 to vector<16x128xf32>
      %349 = arith.select %345, %339, %348 : vector<16x128xi1>, vector<16x128xf32>
      %350 = arith.addf %334, %347 : vector<16x128xf32>
      %351 = arith.addf %335, %349 : vector<16x128xf32>
      %c0_135 = arith.constant 0 : index
      %c2688 = arith.constant 2688 : index
      %352 = vector.load %arg3[%c0_135, %c2688] : memref<16x3072xf32, #tpu.memory_space<vmem>>, vector<16x128xf32>
      %c0_136 = arith.constant 0 : index
      %c2688_137 = arith.constant 2688 : index
      %353 = vector.load %arg4[%c0_136, %c2688_137] : memref<16x3072xf32, #tpu.memory_space<vmem>>, vector<16x128xf32>
      %354 = arith.subf %353, %352 : vector<16x128xf32>
      %355 = arith.mulf %353, %353 : vector<16x128xf32>
      %356 = tpu.iota {dimensions = array<i32: 1>} : vector<16x128xi32>
      %c2688_i32 = arith.constant 2688 : i32
      %357 = arith.addi %11, %c2688_i32 : i32
      %358 = vector.broadcast %357 : i32 to vector<16x128xi32>
      %359 = arith.addi %356, %358 : vector<16x128xi32>
      %c3000_i32_138 = arith.constant 3000 : i32
      %360 = vector.broadcast %c3000_i32_138 : i32 to vector<16x128xi32>
      %361 = arith.cmpi slt, %359, %360 : vector<16x128xi32>
      %cst_139 = arith.constant 0.000000e+00 : f32
      %362 = vector.broadcast %cst_139 : f32 to vector<16x128xf32>
      %363 = arith.select %361, %354, %362 : vector<16x128xi1>, vector<16x128xf32>
      %cst_140 = arith.constant 0.000000e+00 : f32
      %364 = vector.broadcast %cst_140 : f32 to vector<16x128xf32>
      %365 = arith.select %361, %355, %364 : vector<16x128xi1>, vector<16x128xf32>
      %366 = arith.addf %350, %363 : vector<16x128xf32>
      %367 = arith.addf %351, %365 : vector<16x128xf32>
      %c0_141 = arith.constant 0 : index
      %c2816 = arith.constant 2816 : index
      %368 = vector.load %arg3[%c0_141, %c2816] : memref<16x3072xf32, #tpu.memory_space<vmem>>, vector<16x128xf32>
      %c0_142 = arith.constant 0 : index
      %c2816_143 = arith.constant 2816 : index
      %369 = vector.load %arg4[%c0_142, %c2816_143] : memref<16x3072xf32, #tpu.memory_space<vmem>>, vector<16x128xf32>
      %370 = arith.subf %369, %368 : vector<16x128xf32>
      %371 = arith.mulf %369, %369 : vector<16x128xf32>
      %372 = tpu.iota {dimensions = array<i32: 1>} : vector<16x128xi32>
      %c2816_i32 = arith.constant 2816 : i32
      %373 = arith.addi %11, %c2816_i32 : i32
      %374 = vector.broadcast %373 : i32 to vector<16x128xi32>
      %375 = arith.addi %372, %374 : vector<16x128xi32>
      %c3000_i32_144 = arith.constant 3000 : i32
      %376 = vector.broadcast %c3000_i32_144 : i32 to vector<16x128xi32>
      %377 = arith.cmpi slt, %375, %376 : vector<16x128xi32>
      %cst_145 = arith.constant 0.000000e+00 : f32
      %378 = vector.broadcast %cst_145 : f32 to vector<16x128xf32>
      %379 = arith.select %377, %370, %378 : vector<16x128xi1>, vector<16x128xf32>
      %cst_146 = arith.constant 0.000000e+00 : f32
      %380 = vector.broadcast %cst_146 : f32 to vector<16x128xf32>
      %381 = arith.select %377, %371, %380 : vector<16x128xi1>, vector<16x128xf32>
      %382 = arith.addf %366, %379 : vector<16x128xf32>
      %383 = arith.addf %367, %381 : vector<16x128xf32>
      %c0_147 = arith.constant 0 : index
      %c2944 = arith.constant 2944 : index
      %384 = vector.load %arg3[%c0_147, %c2944] : memref<16x3072xf32, #tpu.memory_space<vmem>>, vector<16x128xf32>
      %c0_148 = arith.constant 0 : index
      %c2944_149 = arith.constant 2944 : index
      %385 = vector.load %arg4[%c0_148, %c2944_149] : memref<16x3072xf32, #tpu.memory_space<vmem>>, vector<16x128xf32>
      %386 = arith.subf %385, %384 : vector<16x128xf32>
      %387 = arith.mulf %385, %385 : vector<16x128xf32>
      %388 = tpu.iota {dimensions = array<i32: 1>} : vector<16x128xi32>
      %c2944_i32 = arith.constant 2944 : i32
      %389 = arith.addi %11, %c2944_i32 : i32
      %390 = vector.broadcast %389 : i32 to vector<16x128xi32>
      %391 = arith.addi %388, %390 : vector<16x128xi32>
      %c3000_i32_150 = arith.constant 3000 : i32
      %392 = vector.broadcast %c3000_i32_150 : i32 to vector<16x128xi32>
      %393 = arith.cmpi slt, %391, %392 : vector<16x128xi32>
      %cst_151 = arith.constant 0.000000e+00 : f32
      %394 = vector.broadcast %cst_151 : f32 to vector<16x128xf32>
      %395 = arith.select %393, %386, %394 : vector<16x128xi1>, vector<16x128xf32>
      %cst_152 = arith.constant 0.000000e+00 : f32
      %396 = vector.broadcast %cst_152 : f32 to vector<16x128xf32>
      %397 = arith.select %393, %387, %396 : vector<16x128xi1>, vector<16x128xf32>
      %398 = arith.addf %382, %395 : vector<16x128xf32>
      %399 = arith.addf %383, %397 : vector<16x128xf32>
      %c0_153 = arith.constant 0 : index
      %c0_154 = arith.constant 0 : index
      %c0_155 = arith.constant 0 : index
      %400 = vector.load %arg5[%c0_153, %c0_154, %c0_155] : memref<1x16x128xf32, #tpu.memory_space<vmem>>, vector<1x16x128xf32>
      %401 = vector.shape_cast %400 : vector<1x16x128xf32> to vector<16x128xf32>
      %402 = vector.shape_cast %398 : vector<16x128xf32> to vector<1x16x128xf32>
      tpu.vector_store %arg5[%c0_153, %c0_154, %c0_155], %402 {strides = array<i32>} : memref<1x16x128xf32, #tpu.memory_space<vmem>>, vector<1x16x128xf32>,
      %c0_156 = arith.constant 0 : index
      %c0_157 = arith.constant 0 : index
      %c0_158 = arith.constant 0 : index
      %403 = vector.load %arg6[%c0_156, %c0_157, %c0_158] : memref<1x16x128xf32, #tpu.memory_space<vmem>>, vector<1x16x128xf32>
      %404 = vector.shape_cast %403 : vector<1x16x128xf32> to vector<16x128xf32>
      %405 = vector.shape_cast %399 : vector<16x128xf32> to vector<1x16x128xf32>
      tpu.vector_store %arg6[%c0_156, %c0_157, %c0_158], %405 {strides = array<i32>} : memref<1x16x128xf32, #tpu.memory_space<vmem>>, vector<1x16x128xf32>,
    } else {
    }
    return
  }
  func.func @transform_0(%arg0: i32, %arg1: i32, %arg2: i32) -> (i32, i32) {
    %c1_i32 = arith.constant 1 : i32
    %0 = arith.muli %arg0, %c1_i32 : i32
    %1 = arith.addi %0, %arg2 : i32
    %c0_i32 = arith.constant 0 : i32
    return %arg1, %1 : i32, i32
  }
  func.func @transform_1(%arg0: i32, %arg1: i32, %arg2: i32) -> (i32, i32) {
    %c1_i32 = arith.constant 1 : i32
    %0 = arith.muli %arg0, %c1_i32 : i32
    %1 = arith.addi %0, %arg2 : i32
    %c0_i32 = arith.constant 0 : i32
    return %arg1, %1 : i32, i32
  }
  func.func @transform_2(%arg0: i32, %arg1: i32, %arg2: i32) -> (i32, i32, i32) {
    %c0_i32 = arith.constant 0 : i32
    %c0_i32_0 = arith.constant 0 : i32
    return %arg0, %arg1, %c0_i32 : i32, i32, i32
  }
  func.func @transform_3(%arg0: i32, %arg1: i32, %arg2: i32) -> (i32, i32, i32) {
    %c0_i32 = arith.constant 0 : i32
    %c0_i32_0 = arith.constant 0 : i32
    return %arg0, %arg1, %c0_i32 : i32, i32, i32
  }
}

</mosaic_0001>

<llo_original>
// kernel: tpu_custom_call.1
$region0: #{tpu_custom_call.1}
  #allocation0 [shape = 'u32[]', space=smem, size = 0x4, offset = 0x4, fixed_abs, tag = 'smem constant byte address 0x4 - core index']
  #allocation1 [shape = 'u32[144,128]{1,0:T(1,128)}', space=vmem, size = 0x12000, scoped, tag = 'internal scratch']
  %s0 = inlined_call_operand.hbm [shape: f32[6,3000], index: 0, kind: input, shape index: {}]
  %s1 = inlined_call_operand.hbm [shape: f32[6,3000], index: 1, kind: input, shape index: {}]
  %s2 = inlined_call_operand.hbm [shape: f32[1,16,128], index: 2, kind: output, shape index: {0}]
  %s3 = inlined_call_operand.hbm [shape: f32[1,16,128], index: 3, kind: output, shape index: {1}]
  %4 = xla_tuple %s2, %s3
  %s5 = sld [smem:[#allocation0]]
  $region46: #{tpu_custom_call.1} parent=0
    _
  %s7 = ssub.s32 1, %s5
  %s8 = scalar_select 0, %s7, %s5
  $region1: #{tpu_custom_call.1} parent=0
    #allocation2 [shape = 'u8[196608]{0}', space=vmem, size = 0x30000, scoped, tag = 'input window, operand 0, single buffered']
    #allocation3 [shape = 's32[1]{0}', space=sflag, size = 0x4, scoped, tag = 'scoped memory for tpu_custom_call.1']
    #allocation4 [shape = 's32[1]{0}', space=sflag, size = 0x4, scoped, tag = 'scoped memory for tpu_custom_call.1']
    #allocation5 [shape = 'u8[196608]{0}', space=vmem, size = 0x30000, scoped, tag = 'input window, operand 1, single buffered']
    #allocation6 [shape = 's32[1]{0}', space=sflag, size = 0x4, scoped, tag = 'scoped memory for tpu_custom_call.1']
    #allocation7 [shape = 'u8[8192]{0}', space=vmem, size = 0x2000, scoped, tag = 'output window, operand 0, single buffered']
    #allocation8 [shape = 'u8[8192]{0}', space=vmem, size = 0x2000, scoped, tag = 'output window, operand 1, single buffered']
    #allocation9 [shape = 's32[1]{0}', space=sflag, size = 0x4, scoped, tag = 'scoped memory for tpu_custom_call.1']
    %9 = vsyncpa [#allocation3], 0
    %10 = vsyncpa [#allocation6], 0
    %11 = vsyncpa [#allocation4], 0
    %12 = vsyncpa [#allocation9], 0
    // Predicated region
    $region2: #{tpu_custom_call.1} parent=1 // pred_check
      _
    $region3: #{tpu_custom_call.1} parent=1 // pred_check_branch
      %14 = sbr.rel (0) target = $region5
    $region4: #{tpu_custom_call.1} parent=1 // pred_region
      %s15 = sadd.s32 0, 0
      %s16 = smul.u32 24, %s15
      %s18 = ssub.s32 6144, 3072
      %19 = vsyncadd [#allocation3], %s18
      %s20 = smul.addr %s16, 128
      %s21 = scalar_lea.hbm %s0, %s20
      %s22 = sshll.u32 [#allocation2], 4
      %s23 = int_to_ptr.vmem [resolvable:$true] %s22
      %28 = dma.hbm_to_vmem [thread:$0]  %s21, 3072, %s23, [#allocation3], 3072, 3072, 192
    $region5: #{tpu_custom_call.1} parent=1 // pred_fallthru
      _
    // Predicated region
    $region6: #{tpu_custom_call.1} parent=1 // pred_check
      _
    $region7: #{tpu_custom_call.1} parent=1 // pred_check_branch
      %30 = sbr.rel (0) target = $region9
    $region8: #{tpu_custom_call.1} parent=1 // pred_region
      %s31 = sadd.s32 0, 0
      %s32 = smul.u32 24, %s31
      %s34 = ssub.s32 6144, 3072
      %35 = vsyncadd [#allocation6], %s34
      %s36 = smul.addr %s32, 128
      %s37 = scalar_lea.hbm %s1, %s36
      %s38 = sshll.u32 [#allocation5], 4
      %s39 = int_to_ptr.vmem [resolvable:$true] %s38
      %44 = dma.hbm_to_vmem [thread:$0]  %s37, 3072, %s39, [#allocation6], 3072, 3072, 192
    $region9: #{tpu_custom_call.1} parent=1 // pred_fallthru
      _
    // Predicated region
    $region10: #{tpu_custom_call.1} parent=1 // pred_check
      _
    $region11: #{tpu_custom_call.1} parent=1 // pred_check_branch
      %46 = sbr.rel (0) target = $region13
    $region12: #{tpu_custom_call.1} parent=1 // pred_region
      %47 = dma.done [#allocation3], 6144
    $region13: #{tpu_custom_call.1} parent=1 // pred_fallthru
      _
    // Predicated region
    $region14: #{tpu_custom_call.1} parent=1 // pred_check
      _
    $region15: #{tpu_custom_call.1} parent=1 // pred_check_branch
      %49 = sbr.rel (0) target = $region17
    $region16: #{tpu_custom_call.1} parent=1 // pred_region
      %50 = dma.done [#allocation6], 6144
    $region17: #{tpu_custom_call.1} parent=1 // pred_fallthru
      _
    %s51 = sadd.s32 0, 0
    %s52 = smul.u32 24, %s51
    %s53 = sadd.s32 0, 0
    %s54 = smul.u32 24, %s53
    %p55 = scmp.eq.s32.totalorder 0, 0
    // Predicated region
    $region18: #{tpu_custom_call.1} parent=1 // pred_check
      %p56 = pneg %p55
    $region19: #{tpu_custom_call.1} parent=1 // pred_check_branch
      %58 = sbr.rel (%p56) target = $region21
    $region20: #{tpu_custom_call.1} parent=1 // pred_region
      %59 = vst [vmem:[#allocation7] sm:$0xff] 0.0
      %60 = vst [vmem:[#allocation7 + $0x8] sm:$0xff] 0.0
      %61 = vst [vmem:[#allocation8] sm:$0xff] 0.0
      %62 = vst [vmem:[#allocation8 + $0x8] sm:$0xff] 0.0
    $region21: #{tpu_custom_call.1} parent=1 // pred_fallthru
      _
    %s63 = sadd.s32 0, 0
    %p64 = scmp.ge.s32.totalorder %s63, 0
    %p65 = scmp.lt.s32.totalorder %s63, 0
    // Predicated region
    $region22: #{tpu_custom_call.1} parent=1 // pred_check
      %p66 = pneg %p65
    $region23: #{tpu_custom_call.1} parent=1 // pred_check_branch
      %68 = sbr.rel (%p66) target = $region25
    $region24: #{tpu_custom_call.1} parent=1 // pred_region
      %v69 = vld [vmem:[#allocation7] sm:$0xff]
      %v70 = vld [vmem:[#allocation7 + $0x8] sm:$0xff]
      %v71 = vld [vmem:[#allocation8] sm:$0xff]
      %v72 = vld [vmem:[#allocation8 + $0x8] sm:$0xff]
      %v73 = vld [vmem:[#allocation2] sm:$0xff]
      %v74 = vld [vmem:[#allocation2 + $0xc0] sm:$0xff]
      %v75 = vld [vmem:[#allocation5] sm:$0xff]
      %v76 = vld [vmem:[#allocation5 + $0xc0] sm:$0xff]
      %v77 = vsub.f32 %v75, %v73
      %v78 = vsub.f32 %v76, %v74
      %v79 = vmul.f32 %v75, %v75
      %v80 = vmul.f32 %v76, %v76
      %v81 = vadd.f32 %v69, %v77
      %v82 = vadd.f32 %v70, %v78
      %v83 = vadd.f32 %v71, %v79
      %v84 = vadd.f32 %v72, %v80
      %v85 = vld [vmem:[#allocation2 + $0x8] sm:$0xff]
      %v86 = vld [vmem:[#allocation2 + $0xc8] sm:$0xff]
      %v87 = vld [vmem:[#allocation5 + $0x8] sm:$0xff]
      %v88 = vld [vmem:[#allocation5 + $0xc8] sm:$0xff]
      %v89 = vsub.f32 %v87, %v85
      %v90 = vsub.f32 %v88, %v86
      %v91 = vmul.f32 %v87, %v87
      %v92 = vmul.f32 %v88, %v88
      %v93 = vadd.f32 %v81, %v89
      %v94 = vadd.f32 %v82, %v90
      %v95 = vadd.f32 %v83, %v91
      %v96 = vadd.f32 %v84, %v92
      %v97 = vld [vmem:[#allocation2 + $0x10] sm:$0xff]
      %v98 = vld [vmem:[#allocation2 + $0xd0] sm:$0xff]
      %v99 = vld [vmem:[#allocation5 + $0x10] sm:$0xff]
      %v100 = vld [vmem:[#allocation5 + $0xd0] sm:$0xff]
      %v101 = vsub.f32 %v99, %v97
      %v102 = vsub.f32 %v100, %v98
      %v103 = vmul.f32 %v99, %v99
      %v104 = vmul.f32 %v100, %v100
      %v105 = vadd.f32 %v93, %v101
      %v106 = vadd.f32 %v94, %v102
      %v107 = vadd.f32 %v95, %v103
      %v108 = vadd.f32 %v96, %v104
      %v109 = vld [vmem:[#allocation2 + $0x18] sm:$0xff]
      %v110 = vld [vmem:[#allocation2 + $0xd8] sm:$0xff]
      %v111 = vld [vmem:[#allocation5 + $0x18] sm:$0xff]
      %v112 = vld [vmem:[#allocation5 + $0xd8] sm:$0xff]
      %v113 = vsub.f32 %v111, %v109
      %v114 = vsub.f32 %v112, %v110
      %v115 = vmul.f32 %v111, %v111
      %v116 = vmul.f32 %v112, %v112
      %v117 = vadd.f32 %v105, %v113
      %v118 = vadd.f32 %v106, %v114
      %v119 = vadd.f32 %v107, %v115
      %v120 = vadd.f32 %v108, %v116
      %v121 = vld [vmem:[#allocation2 + $0x20] sm:$0xff]
      %v122 = vld [vmem:[#allocation2 + $0xe0] sm:$0xff]
      %v123 = vld [vmem:[#allocation5 + $0x20] sm:$0xff]
      %v124 = vld [vmem:[#allocation5 + $0xe0] sm:$0xff]
      %v125 = vsub.f32 %v123, %v121
      %v126 = vsub.f32 %v124, %v122
      %v127 = vmul.f32 %v123, %v123
      %v128 = vmul.f32 %v124, %v124
      %v129 = vadd.f32 %v117, %v125
      %v130 = vadd.f32 %v118, %v126
      %v131 = vadd.f32 %v119, %v127
      %v132 = vadd.f32 %v120, %v128
      %v133 = vld [vmem:[#allocation2 + $0x28] sm:$0xff]
      %v134 = vld [vmem:[#allocation2 + $0xe8] sm:$0xff]
      %v135 = vld [vmem:[#allocation5 + $0x28] sm:$0xff]
      %v136 = vld [vmem:[#allocation5 + $0xe8] sm:$0xff]
      %v137 = vsub.f32 %v135, %v133
      %v138 = vsub.f32 %v136, %v134
      %v139 = vmul.f32 %v135, %v135
      %v140 = vmul.f32 %v136, %v136
      %v141 = vadd.f32 %v129, %v137
      %v142 = vadd.f32 %v130, %v138
      %v143 = vadd.f32 %v131, %v139
      %v144 = vadd.f32 %v132, %v140
      %v145 = vld [vmem:[#allocation2 + $0x30] sm:$0xff]
      %v146 = vld [vmem:[#allocation2 + $0xf0] sm:$0xff]
      %v147 = vld [vmem:[#allocation5 + $0x30] sm:$0xff]
      %v148 = vld [vmem:[#allocation5 + $0xf0] sm:$0xff]
      %v149 = vsub.f32 %v147, %v145
      %v150 = vsub.f32 %v148, %v146
      %v151 = vmul.f32 %v147, %v147
      %v152 = vmul.f32 %v148, %v148
      %v153 = vadd.f32 %v141, %v149
      %v154 = vadd.f32 %v142, %v150
      %v155 = vadd.f32 %v143, %v151
      %v156 = vadd.f32 %v144, %v152
      %v157 = vld [vmem:[#allocation2 + $0x38] sm:$0xff]
      %v158 = vld [vmem:[#allocation2 + $0xf8] sm:$0xff]
      %v159 = vld [vmem:[#allocation5 + $0x38] sm:$0xff]
      %v160 = vld [vmem:[#allocation5 + $0xf8] sm:$0xff]
      %v161 = vsub.f32 %v159, %v157
      %v162 = vsub.f32 %v160, %v158
      %v163 = vmul.f32 %v159, %v159
      %v164 = vmul.f32 %v160, %v160
      %v165 = vadd.f32 %v153, %v161
      %v166 = vadd.f32 %v154, %v162
      %v167 = vadd.f32 %v155, %v163
      %v168 = vadd.f32 %v156, %v164
      %v169 = vld [vmem:[#allocation2 + $0x40] sm:$0xff]
      %v170 = vld [vmem:[#allocation2 + $0x100] sm:$0xff]
      %v171 = vld [vmem:[#allocation5 + $0x40] sm:$0xff]
      %v172 = vld [vmem:[#allocation5 + $0x100] sm:$0xff]
      %v173 = vsub.f32 %v171, %v169
      %v174 = vsub.f32 %v172, %v170
      %v175 = vmul.f32 %v171, %v171
      %v176 = vmul.f32 %v172, %v172
      %v177 = vadd.f32 %v165, %v173
      %v178 = vadd.f32 %v166, %v174
      %v179 = vadd.f32 %v167, %v175
      %v180 = vadd.f32 %v168, %v176
      %v181 = vld [vmem:[#allocation2 + $0x48] sm:$0xff]
      %v182 = vld [vmem:[#allocation2 + $0x108] sm:$0xff]
      %v183 = vld [vmem:[#allocation5 + $0x48] sm:$0xff]
      %v184 = vld [vmem:[#allocation5 + $0x108] sm:$0xff]
      %v185 = vsub.f32 %v183, %v181
      %v186 = vsub.f32 %v184, %v182
      %v187 = vmul.f32 %v183, %v183
      %v188 = vmul.f32 %v184, %v184
      %v189 = vadd.f32 %v177, %v185
      %v190 = vadd.f32 %v178, %v186
      %v191 = vadd.f32 %v179, %v187
      %v192 = vadd.f32 %v180, %v188
      %v193 = vld [vmem:[#allocation2 + $0x50] sm:$0xff]
      %v194 = vld [vmem:[#allocation2 + $0x110] sm:$0xff]
      %v195 = vld [vmem:[#allocation5 + $0x50] sm:$0xff]
      %v196 = vld [vmem:[#allocation5 + $0x110] sm:$0xff]
      %v197 = vsub.f32 %v195, %v193
      %v198 = vsub.f32 %v196, %v194
      %v199 = vmul.f32 %v195, %v195
      %v200 = vmul.f32 %v196, %v196
      %v201 = vadd.f32 %v189, %v197
      %v202 = vadd.f32 %v190, %v198
      %v203 = vadd.f32 %v191, %v199
      %v204 = vadd.f32 %v192, %v200
      %v205 = vld [vmem:[#allocation2 + $0x58] sm:$0xff]
      %v206 = vld [vmem:[#allocation2 + $0x118] sm:$0xff]
      %v207 = vld [vmem:[#allocation5 + $0x58] sm:$0xff]
      %v208 = vld [vmem:[#allocation5 + $0x118] sm:$0xff]
      %v209 = vsub.f32 %v207, %v205
      %v210 = vsub.f32 %v208, %v206
      %v211 = vmul.f32 %v207, %v207
      %v212 = vmul.f32 %v208, %v208
      %v213 = vadd.f32 %v201, %v209
      %v214 = vadd.f32 %v202, %v210
      %v215 = vadd.f32 %v203, %v211
      %v216 = vadd.f32 %v204, %v212
      %v217 = vld [vmem:[#allocation2 + $0x60] sm:$0xff]
      %v218 = vld [vmem:[#allocation2 + $0x120] sm:$0xff]
      %v219 = vld [vmem:[#allocation5 + $0x60] sm:$0xff]
      %v220 = vld [vmem:[#allocation5 + $0x120] sm:$0xff]
      %v221 = vsub.f32 %v219, %v217
      %v222 = vsub.f32 %v220, %v218
      %v223 = vmul.f32 %v219, %v219
      %v224 = vmul.f32 %v220, %v220
      %v225 = vadd.f32 %v213, %v221
      %v226 = vadd.f32 %v214, %v222
      %v227 = vadd.f32 %v215, %v223
      %v228 = vadd.f32 %v216, %v224
      %v229 = vld [vmem:[#allocation2 + $0x68] sm:$0xff]
      %v230 = vld [vmem:[#allocation2 + $0x128] sm:$0xff]
      %v231 = vld [vmem:[#allocation5 + $0x68] sm:$0xff]
      %v232 = vld [vmem:[#allocation5 + $0x128] sm:$0xff]
      %v233 = vsub.f32 %v231, %v229
      %v234 = vsub.f32 %v232, %v230
      %v235 = vmul.f32 %v231, %v231
      %v236 = vmul.f32 %v232, %v232
      %v237 = vadd.f32 %v225, %v233
      %v238 = vadd.f32 %v226, %v234
      %v239 = vadd.f32 %v227, %v235
      %v240 = vadd.f32 %v228, %v236
      %v241 = vld [vmem:[#allocation2 + $0x70] sm:$0xff]
      %v242 = vld [vmem:[#allocation2 + $0x130] sm:$0xff]
      %v243 = vld [vmem:[#allocation5 + $0x70] sm:$0xff]
      %v244 = vld [vmem:[#allocation5 + $0x130] sm:$0xff]
      %v245 = vsub.f32 %v243, %v241
      %v246 = vsub.f32 %v244, %v242
      %v247 = vmul.f32 %v243, %v243
      %v248 = vmul.f32 %v244, %v244
      %v249 = vadd.f32 %v237, %v245
      %v250 = vadd.f32 %v238, %v246
      %v251 = vadd.f32 %v239, %v247
      %v252 = vadd.f32 %v240, %v248
      %v253 = vld [vmem:[#allocation2 + $0x78] sm:$0xff]
      %v254 = vld [vmem:[#allocation2 + $0x138] sm:$0xff]
      %v255 = vld [vmem:[#allocation5 + $0x78] sm:$0xff]
      %v256 = vld [vmem:[#allocation5 + $0x138] sm:$0xff]
      %v257 = vsub.f32 %v255, %v253
      %v258 = vsub.f32 %v256, %v254
      %v259 = vmul.f32 %v255, %v255
      %v260 = vmul.f32 %v256, %v256
      %v261 = vadd.f32 %v249, %v257
      %v262 = vadd.f32 %v250, %v258
      %v263 = vadd.f32 %v251, %v259
      %v264 = vadd.f32 %v252, %v260
      %v265 = vld [vmem:[#allocation2 + $0x80] sm:$0xff]
      %v266 = vld [vmem:[#allocation2 + $0x140] sm:$0xff]
      %v267 = vld [vmem:[#allocation5 + $0x80] sm:$0xff]
      %v268 = vld [vmem:[#allocation5 + $0x140] sm:$0xff]
      %v269 = vsub.f32 %v267, %v265
      %v270 = vsub.f32 %v268, %v266
      %v271 = vmul.f32 %v267, %v267
      %v272 = vmul.f32 %v268, %v268
      %v273 = vadd.f32 %v261, %v269
      %v274 = vadd.f32 %v262, %v270
      %v275 = vadd.f32 %v263, %v271
      %v276 = vadd.f32 %v264, %v272
      %v277 = vld [vmem:[#allocation2 + $0x88] sm:$0xff]
      %v278 = vld [vmem:[#allocation2 + $0x148] sm:$0xff]
      %v279 = vld [vmem:[#allocation5 + $0x88] sm:$0xff]
      %v280 = vld [vmem:[#allocation5 + $0x148] sm:$0xff]
      %v281 = vsub.f32 %v279, %v277
      %v282 = vsub.f32 %v280, %v278
      %v283 = vmul.f32 %v279, %v279
      %v284 = vmul.f32 %v280, %v280
      %v285 = vadd.f32 %v273, %v281
      %v286 = vadd.f32 %v274, %v282
      %v287 = vadd.f32 %v275, %v283
      %v288 = vadd.f32 %v276, %v284
      %v289 = vld [vmem:[#allocation2 + $0x90] sm:$0xff]
      %v290 = vld [vmem:[#allocation2 + $0x150] sm:$0xff]
      %v291 = vld [vmem:[#allocation5 + $0x90] sm:$0xff]
      %v292 = vld [vmem:[#allocation5 + $0x150] sm:$0xff]
      %v293 = vsub.f32 %v291, %v289
      %v294 = vsub.f32 %v292, %v290
      %v295 = vmul.f32 %v291, %v291
      %v296 = vmul.f32 %v292, %v292
      %v297 = vadd.f32 %v285, %v293
      %v298 = vadd.f32 %v286, %v294
      %v299 = vadd.f32 %v287, %v295
      %v300 = vadd.f32 %v288, %v296
      %v301 = vld [vmem:[#allocation2 + $0x98] sm:$0xff]
      %v302 = vld [vmem:[#allocation2 + $0x158] sm:$0xff]
      %v303 = vld [vmem:[#allocation5 + $0x98] sm:$0xff]
      %v304 = vld [vmem:[#allocation5 + $0x158] sm:$0xff]
      %v305 = vsub.f32 %v303, %v301
      %v306 = vsub.f32 %v304, %v302
      %v307 = vmul.f32 %v303, %v303
      %v308 = vmul.f32 %v304, %v304
      %v309 = vadd.f32 %v297, %v305
      %v310 = vadd.f32 %v298, %v306
      %v311 = vadd.f32 %v299, %v307
      %v312 = vadd.f32 %v300, %v308
      %v313 = vld [vmem:[#allocation2 + $0xa0] sm:$0xff]
      %v314 = vld [vmem:[#allocation2 + $0x160] sm:$0xff]
      %v315 = vld [vmem:[#allocation5 + $0xa0] sm:$0xff]
      %v316 = vld [vmem:[#allocation5 + $0x160] sm:$0xff]
      %v317 = vsub.f32 %v315, %v313
      %v318 = vsub.f32 %v316, %v314
      %v319 = vmul.f32 %v315, %v315
      %v320 = vmul.f32 %v316, %v316
      %v321 = vadd.f32 %v309, %v317
      %v322 = vadd.f32 %v310, %v318
      %v323 = vadd.f32 %v311, %v319
      %v324 = vadd.f32 %v312, %v320
      %v325 = vld [vmem:[#allocation2 + $0xa8] sm:$0xff]
      %v326 = vld [vmem:[#allocation2 + $0x168] sm:$0xff]
      %v327 = vld [vmem:[#allocation5 + $0xa8] sm:$0xff]
      %v328 = vld [vmem:[#allocation5 + $0x168] sm:$0xff]
      %v329 = vsub.f32 %v327, %v325
      %v330 = vsub.f32 %v328, %v326
      %v331 = vmul.f32 %v327, %v327
      %v332 = vmul.f32 %v328, %v328
      %v333 = vadd.f32 %v321, %v329
      %v334 = vadd.f32 %v322, %v330
      %v335 = vadd.f32 %v323, %v331
      %v336 = vadd.f32 %v324, %v332
      %v337 = vld [vmem:[#allocation2 + $0xb0] sm:$0xff]
      %v338 = vld [vmem:[#allocation2 + $0x170] sm:$0xff]
      %v339 = vld [vmem:[#allocation5 + $0xb0] sm:$0xff]
      %v340 = vld [vmem:[#allocation5 + $0x170] sm:$0xff]
      %v341 = vsub.f32 %v339, %v337
      %v342 = vsub.f32 %v340, %v338
      %v343 = vmul.f32 %v339, %v339
      %v344 = vmul.f32 %v340, %v340
      %v345 = vadd.f32 %v333, %v341
      %v346 = vadd.f32 %v334, %v342
      %v347 = vadd.f32 %v335, %v343
      %v348 = vadd.f32 %v336, %v344
      %v349 = vld [vmem:[#allocation2 + $0xb8] sm:$0xff]
      %v350 = vld [vmem:[#allocation2 + $0x178] sm:$0xff]
      %v351 = vld [vmem:[#allocation5 + $0xb8] sm:$0xff]
      %v352 = vld [vmem:[#allocation5 + $0x178] sm:$0xff]
      %v353 = vsub.f32 %v351, %v349
      %v354 = vsub.f32 %v352, %v350
      %v355 = vmul.f32 %v351, %v351
      %v356 = vmul.f32 %v352, %v352
      %v357 = vadd.f32 %v345, %v353
      %v358 = vadd.f32 %v346, %v354
      %v359 = vadd.f32 %v347, %v355
      %v360 = vadd.f32 %v348, %v356
      %361 = vst [vmem:[#allocation7] sm:$0xff] %v357
      %362 = vst [vmem:[#allocation7 + $0x8] sm:$0xff] %v358
      %363 = vst [vmem:[#allocation8] sm:$0xff] %v359
      %364 = vst [vmem:[#allocation8 + $0x8] sm:$0xff] %v360
    $region25: #{tpu_custom_call.1} parent=1 // pred_fallthru
      _
    // Predicated region
    $region26: #{tpu_custom_call.1} parent=1 // pred_check
      %p365 = pneg %p64
    $region27: #{tpu_custom_call.1} parent=1 // pred_check_branch
      %367 = sbr.rel (%p365) target = $region29
    $region28: #{tpu_custom_call.1} parent=1 // pred_region
      %s368 = smul.u32 %s63, 3072
      %v369 = vld [vmem:[#allocation7] sm:$0xff]
      %v370 = vld [vmem:[#allocation7 + $0x8] sm:$0xff]
      %v371 = vld [vmem:[#allocation8] sm:$0xff]
      %v372 = vld [vmem:[#allocation8 + $0x8] sm:$0xff]
      %v373 = vld [vmem:[#allocation2] sm:$0xff]
      %v374 = vld [vmem:[#allocation2 + $0xc0] sm:$0xff]
      %v375 = vld [vmem:[#allocation5] sm:$0xff]
      %v376 = vld [vmem:[#allocation5 + $0xc0] sm:$0xff]
      %v377 = vsub.f32 %v375, %v373
      %v378 = vsub.f32 %v376, %v374
      %v379 = vmul.f32 %v375, %v375
      %v380 = vmul.f32 %v376, %v376
      %v381 = vlaneseq
      %v382 = vand.u32 %v381, 127
      %v383 = vstv %s368
      %v384 = vadd.s32 %v382, %v383
      %vm385 = vcmp.lt.s32.totalorder %v384, 3000
      %v386 = vsel %vm385, %v377, 0.0
      %v387 = vsel %vm385, %v378, 0.0
      %v388 = vsel %vm385, %v379, 0.0
      %v389 = vsel %vm385, %v380, 0.0
      %v390 = vadd.f32 %v369, %v386
      %v391 = vadd.f32 %v370, %v387
      %v392 = vadd.f32 %v371, %v388
      %v393 = vadd.f32 %v372, %v389
      %v394 = vld [vmem:[#allocation2 + $0x8] sm:$0xff]
      %v395 = vld [vmem:[#allocation2 + $0xc8] sm:$0xff]
      %v396 = vld [vmem:[#allocation5 + $0x8] sm:$0xff]
      %v397 = vld [vmem:[#allocation5 + $0xc8] sm:$0xff]
      %v398 = vsub.f32 %v396, %v394
      %v399 = vsub.f32 %v397, %v395
      %v400 = vmul.f32 %v396, %v396
      %v401 = vmul.f32 %v397, %v397
      %s402 = sadd.s32 %s368, 128
      %v403 = vstv %s402
      %v404 = vadd.s32 %v382, %v403
      %vm405 = vcmp.lt.s32.totalorder %v404, 3000
      %v406 = vsel %vm405, %v398, 0.0
      %v407 = vsel %vm405, %v399, 0.0
      %v408 = vsel %vm405, %v400, 0.0
      %v409 = vsel %vm405, %v401, 0.0
      %v410 = vadd.f32 %v390, %v406
      %v411 = vadd.f32 %v391, %v407
      %v412 = vadd.f32 %v392, %v408
      %v413 = vadd.f32 %v393, %v409
      %v414 = vld [vmem:[#allocation2 + $0x10] sm:$0xff]
      %v415 = vld [vmem:[#allocation2 + $0xd0] sm:$0xff]
      %v416 = vld [vmem:[#allocation5 + $0x10] sm:$0xff]
      %v417 = vld [vmem:[#allocation5 + $0xd0] sm:$0xff]
      %v418 = vsub.f32 %v416, %v414
      %v419 = vsub.f32 %v417, %v415
      %v420 = vmul.f32 %v416, %v416
      %v421 = vmul.f32 %v417, %v417
      %s422 = sadd.s32 %s368, 256
      %v423 = vstv %s422
      %v424 = vadd.s32 %v382, %v423
      %vm425 = vcmp.lt.s32.totalorder %v424, 3000
      %v426 = vsel %vm425, %v418, 0.0
      %v427 = vsel %vm425, %v419, 0.0
      %v428 = vsel %vm425, %v420, 0.0
      %v429 = vsel %vm425, %v421, 0.0
      %v430 = vadd.f32 %v410, %v426
      %v431 = vadd.f32 %v411, %v427
      %v432 = vadd.f32 %v412, %v428
      %v433 = vadd.f32 %v413, %v429
      %v434 = vld [vmem:[#allocation2 + $0x18] sm:$0xff]
      %v435 = vld [vmem:[#allocation2 + $0xd8] sm:$0xff]
      %v436 = vld [vmem:[#allocation5 + $0x18] sm:$0xff]
      %v437 = vld [vmem:[#allocation5 + $0xd8] sm:$0xff]
      %v438 = vsub.f32 %v436, %v434
      %v439 = vsub.f32 %v437, %v435
      %v440 = vmul.f32 %v436, %v436
      %v441 = vmul.f32 %v437, %v437
      %s442 = sadd.s32 %s368, 384
      %v443 = vstv %s442
      %v444 = vadd.s32 %v382, %v443
      %vm445 = vcmp.lt.s32.totalorder %v444, 3000
      %v446 = vsel %vm445, %v438, 0.0
      %v447 = vsel %vm445, %v439, 0.0
      %v448 = vsel %vm445, %v440, 0.0
      %v449 = vsel %vm445, %v441, 0.0
      %v450 = vadd.f32 %v430, %v446
      %v451 = vadd.f32 %v431, %v447
      %v452 = vadd.f32 %v432, %v448
      %v453 = vadd.f32 %v433, %v449
      %v454 = vld [vmem:[#allocation2 + $0x20] sm:$0xff]
      %v455 = vld [vmem:[#allocation2 + $0xe0] sm:$0xff]
      %v456 = vld [vmem:[#allocation5 + $0x20] sm:$0xff]
      %v457 = vld [vmem:[#allocation5 + $0xe0] sm:$0xff]
      %v458 = vsub.f32 %v456, %v454
      %v459 = vsub.f32 %v457, %v455
      %v460 = vmul.f32 %v456, %v456
      %v461 = vmul.f32 %v457, %v457
      %s462 = sadd.s32 %s368, 512
      %v463 = vstv %s462
      %v464 = vadd.s32 %v382, %v463
      %vm465 = vcmp.lt.s32.totalorder %v464, 3000
      %v466 = vsel %vm465, %v458, 0.0
      %v467 = vsel %vm465, %v459, 0.0
      %v468 = vsel %vm465, %v460, 0.0
      %v469 = vsel %vm465, %v461, 0.0
      %v470 = vadd.f32 %v450, %v466
      %v471 = vadd.f32 %v451, %v467
      %v472 = vadd.f32 %v452, %v468
      %v473 = vadd.f32 %v453, %v469
      %v474 = vld [vmem:[#allocation2 + $0x28] sm:$0xff]
      %v475 = vld [vmem:[#allocation2 + $0xe8] sm:$0xff]
      %v476 = vld [vmem:[#allocation5 + $0x28] sm:$0xff]
      %v477 = vld [vmem:[#allocation5 + $0xe8] sm:$0xff]
      %v478 = vsub.f32 %v476, %v474
      %v479 = vsub.f32 %v477, %v475
      %v480 = vmul.f32 %v476, %v476
      %v481 = vmul.f32 %v477, %v477
      %s482 = sadd.s32 %s368, 640
      %v483 = vstv %s482
      %v484 = vadd.s32 %v382, %v483
      %vm485 = vcmp.lt.s32.totalorder %v484, 3000
      %v486 = vsel %vm485, %v478, 0.0
      %v487 = vsel %vm485, %v479, 0.0
      %v488 = vsel %vm485, %v480, 0.0
      %v489 = vsel %vm485, %v481, 0.0
      %v490 = vadd.f32 %v470, %v486
      %v491 = vadd.f32 %v471, %v487
      %v492 = vadd.f32 %v472, %v488
      %v493 = vadd.f32 %v473, %v489
      %v494 = vld [vmem:[#allocation2 + $0x30] sm:$0xff]
      %v495 = vld [vmem:[#allocation2 + $0xf0] sm:$0xff]
      %v496 = vld [vmem:[#allocation5 + $0x30] sm:$0xff]
      %v497 = vld [vmem:[#allocation5 + $0xf0] sm:$0xff]
      %v498 = vsub.f32 %v496, %v494
      %v499 = vsub.f32 %v497, %v495
      %v500 = vmul.f32 %v496, %v496
      %v501 = vmul.f32 %v497, %v497
      %s502 = sadd.s32 %s368, 768
      %v503 = vstv %s502
      %v504 = vadd.s32 %v382, %v503
      %vm505 = vcmp.lt.s32.totalorder %v504, 3000
      %v506 = vsel %vm505, %v498, 0.0
      %v507 = vsel %vm505, %v499, 0.0
      %v508 = vsel %vm505, %v500, 0.0
      %v509 = vsel %vm505, %v501, 0.0
      %v510 = vadd.f32 %v490, %v506
      %v511 = vadd.f32 %v491, %v507
      %v512 = vadd.f32 %v492, %v508
      %v513 = vadd.f32 %v493, %v509
      %v514 = vld [vmem:[#allocation2 + $0x38] sm:$0xff]
      %v515 = vld [vmem:[#allocation2 + $0xf8] sm:$0xff]
      %v516 = vld [vmem:[#allocation5 + $0x38] sm:$0xff]
      %v517 = vld [vmem:[#allocation5 + $0xf8] sm:$0xff]
      %v518 = vsub.f32 %v516, %v514
      %v519 = vsub.f32 %v517, %v515
      %v520 = vmul.f32 %v516, %v516
      %v521 = vmul.f32 %v517, %v517
      %s522 = sadd.s32 %s368, 896
      %v523 = vstv %s522
      %v524 = vadd.s32 %v382, %v523
      %vm525 = vcmp.lt.s32.totalorder %v524, 3000
      %v526 = vsel %vm525, %v518, 0.0
      %v527 = vsel %vm525, %v519, 0.0
      %v528 = vsel %vm525, %v520, 0.0
      %v529 = vsel %vm525, %v521, 0.0
      %v530 = vadd.f32 %v510, %v526
      %v531 = vadd.f32 %v511, %v527
      %v532 = vadd.f32 %v512, %v528
      %v533 = vadd.f32 %v513, %v529
      %v534 = vld [vmem:[#allocation2 + $0x40] sm:$0xff]
      %v535 = vld [vmem:[#allocation2 + $0x100] sm:$0xff]
      %v536 = vld [vmem:[#allocation5 + $0x40] sm:$0xff]
      %v537 = vld [vmem:[#allocation5 + $0x100] sm:$0xff]
      %v538 = vsub.f32 %v536, %v534
      %v539 = vsub.f32 %v537, %v535
      %v540 = vmul.f32 %v536, %v536
      %v541 = vmul.f32 %v537, %v537
      %s542 = sadd.s32 %s368, 1024
      %v543 = vstv %s542
      %v544 = vadd.s32 %v382, %v543
      %vm545 = vcmp.lt.s32.totalorder %v544, 3000
      %v546 = vsel %vm545, %v538, 0.0
      %v547 = vsel %vm545, %v539, 0.0
      %v548 = vsel %vm545, %v540, 0.0
      %v549 = vsel %vm545, %v541, 0.0
      %v550 = vadd.f32 %v530, %v546
      %v551 = vadd.f32 %v531, %v547
      %v552 = vadd.f32 %v532, %v548
      %v553 = vadd.f32 %v533, %v549
      %v554 = vld [vmem:[#allocation2 + $0x48] sm:$0xff]
      %v555 = vld [vmem:[#allocation2 + $0x108] sm:$0xff]
      %v556 = vld [vmem:[#allocation5 + $0x48] sm:$0xff]
      %v557 = vld [vmem:[#allocation5 + $0x108] sm:$0xff]
      %v558 = vsub.f32 %v556, %v554
      %v559 = vsub.f32 %v557, %v555
      %v560 = vmul.f32 %v556, %v556
      %v561 = vmul.f32 %v557, %v557
      %s562 = sadd.s32 %s368, 1152
      %v563 = vstv %s562
      %v564 = vadd.s32 %v382, %v563
      %vm565 = vcmp.lt.s32.totalorder %v564, 3000
      %v566 = vsel %vm565, %v558, 0.0
      %v567 = vsel %vm565, %v559, 0.0
      %v568 = vsel %vm565, %v560, 0.0
      %v569 = vsel %vm565, %v561, 0.0
      %v570 = vadd.f32 %v550, %v566
      %v571 = vadd.f32 %v551, %v567
      %v572 = vadd.f32 %v552, %v568
      %v573 = vadd.f32 %v553, %v569
      %v574 = vld [vmem:[#allocation2 + $0x50] sm:$0xff]
      %v575 = vld [vmem:[#allocation2 + $0x110] sm:$0xff]
      %v576 = vld [vmem:[#allocation5 + $0x50] sm:$0xff]
      %v577 = vld [vmem:[#allocation5 + $0x110] sm:$0xff]
      %v578 = vsub.f32 %v576, %v574
      %v579 = vsub.f32 %v577, %v575
      %v580 = vmul.f32 %v576, %v576
      %v581 = vmul.f32 %v577, %v577
      %s582 = sadd.s32 %s368, 1280
      %v583 = vstv %s582
      %v584 = vadd.s32 %v382, %v583
      %vm585 = vcmp.lt.s32.totalorder %v584, 3000
      %v586 = vsel %vm585, %v578, 0.0
      %v587 = vsel %vm585, %v579, 0.0
      %v588 = vsel %vm585, %v580, 0.0
      %v589 = vsel %vm585, %v581, 0.0
      %v590 = vadd.f32 %v570, %v586
      %v591 = vadd.f32 %v571, %v587
      %v592 = vadd.f32 %v572, %v588
      %v593 = vadd.f32 %v573, %v589
      %v594 = vld [vmem:[#allocation2 + $0x58] sm:$0xff]
      %v595 = vld [vmem:[#allocation2 + $0x118] sm:$0xff]
      %v596 = vld [vmem:[#allocation5 + $0x58] sm:$0xff]
      %v597 = vld [vmem:[#allocation5 + $0x118] sm:$0xff]
      %v598 = vsub.f32 %v596, %v594
      %v599 = vsub.f32 %v597, %v595
      %v600 = vmul.f32 %v596, %v596
      %v601 = vmul.f32 %v597, %v597
      %s602 = sadd.s32 %s368, 1408
      %v603 = vstv %s602
      %v604 = vadd.s32 %v382, %v603
      %vm605 = vcmp.lt.s32.totalorder %v604, 3000
      %v606 = vsel %vm605, %v598, 0.0
      %v607 = vsel %vm605, %v599, 0.0
      %v608 = vsel %vm605, %v600, 0.0
      %v609 = vsel %vm605, %v601, 0.0
      %v610 = vadd.f32 %v590, %v606
      %v611 = vadd.f32 %v591, %v607
      %v612 = vadd.f32 %v592, %v608
      %v613 = vadd.f32 %v593, %v609
      %v614 = vld [vmem:[#allocation2 + $0x60] sm:$0xff]
      %v615 = vld [vmem:[#allocation2 + $0x120] sm:$0xff]
      %v616 = vld [vmem:[#allocation5 + $0x60] sm:$0xff]
      %v617 = vld [vmem:[#allocation5 + $0x120] sm:$0xff]
      %v618 = vsub.f32 %v616, %v614
      %v619 = vsub.f32 %v617, %v615
      %v620 = vmul.f32 %v616, %v616
      %v621 = vmul.f32 %v617, %v617
      %s622 = sadd.s32 %s368, 1536
      %v623 = vstv %s622
      %v624 = vadd.s32 %v382, %v623
      %vm625 = vcmp.lt.s32.totalorder %v624, 3000
      %v626 = vsel %vm625, %v618, 0.0
      %v627 = vsel %vm625, %v619, 0.0
      %v628 = vsel %vm625, %v620, 0.0
      %v629 = vsel %vm625, %v621, 0.0
      %v630 = vadd.f32 %v610, %v626
      %v631 = vadd.f32 %v611, %v627
      %v632 = vadd.f32 %v612, %v628
      %v633 = vadd.f32 %v613, %v629
      %v634 = vld [vmem:[#allocation2 + $0x68] sm:$0xff]
      %v635 = vld [vmem:[#allocation2 + $0x128] sm:$0xff]
      %v636 = vld [vmem:[#allocation5 + $0x68] sm:$0xff]
      %v637 = vld [vmem:[#allocation5 + $0x128] sm:$0xff]
      %v638 = vsub.f32 %v636, %v634
      %v639 = vsub.f32 %v637, %v635
      %v640 = vmul.f32 %v636, %v636
      %v641 = vmul.f32 %v637, %v637
      %s642 = sadd.s32 %s368, 1664
      %v643 = vstv %s642
      %v644 = vadd.s32 %v382, %v643
      %vm645 = vcmp.lt.s32.totalorder %v644, 3000
      %v646 = vsel %vm645, %v638, 0.0
      %v647 = vsel %vm645, %v639, 0.0
      %v648 = vsel %vm645, %v640, 0.0
      %v649 = vsel %vm645, %v641, 0.0
      %v650 = vadd.f32 %v630, %v646
      %v651 = vadd.f32 %v631, %v647
      %v652 = vadd.f32 %v632, %v648
      %v653 = vadd.f32 %v633, %v649
      %v654 = vld [vmem:[#allocation2 + $0x70] sm:$0xff]
      %v655 = vld [vmem:[#allocation2 + $0x130] sm:$0xff]
      %v656 = vld [vmem:[#allocation5 + $0x70] sm:$0xff]
      %v657 = vld [vmem:[#allocation5 + $0x130] sm:$0xff]
      %v658 = vsub.f32 %v656, %v654
      %v659 = vsub.f32 %v657, %v655
      %v660 = vmul.f32 %v656, %v656
      %v661 = vmul.f32 %v657, %v657
      %s662 = sadd.s32 %s368, 1792
      %v663 = vstv %s662
      %v664 = vadd.s32 %v382, %v663
      %vm665 = vcmp.lt.s32.totalorder %v664, 3000
      %v666 = vsel %vm665, %v658, 0.0
      %v667 = vsel %vm665, %v659, 0.0
      %v668 = vsel %vm665, %v660, 0.0
      %v669 = vsel %vm665, %v661, 0.0
      %v670 = vadd.f32 %v650, %v666
      %v671 = vadd.f32 %v651, %v667
      %v672 = vadd.f32 %v652, %v668
      %v673 = vadd.f32 %v653, %v669
      %v674 = vld [vmem:[#allocation2 + $0x78] sm:$0xff]
      %v675 = vld [vmem:[#allocation2 + $0x138] sm:$0xff]
      %v676 = vld [vmem:[#allocation5 + $0x78] sm:$0xff]
      %v677 = vld [vmem:[#allocation5 + $0x138] sm:$0xff]
      %v678 = vsub.f32 %v676, %v674
      %v679 = vsub.f32 %v677, %v675
      %v680 = vmul.f32 %v676, %v676
      %v681 = vmul.f32 %v677, %v677
      %s682 = sadd.s32 %s368, 1920
      %v683 = vstv %s682
      %v684 = vadd.s32 %v382, %v683
      %vm685 = vcmp.lt.s32.totalorder %v684, 3000
      %v686 = vsel %vm685, %v678, 0.0
      %v687 = vsel %vm685, %v679, 0.0
      %v688 = vsel %vm685, %v680, 0.0
      %v689 = vsel %vm685, %v681, 0.0
      %v690 = vadd.f32 %v670, %v686
      %v691 = vadd.f32 %v671, %v687
      %v692 = vadd.f32 %v672, %v688
      %v693 = vadd.f32 %v673, %v689
      %v694 = vld [vmem:[#allocation2 + $0x80] sm:$0xff]
      %v695 = vld [vmem:[#allocation2 + $0x140] sm:$0xff]
      %v696 = vld [vmem:[#allocation5 + $0x80] sm:$0xff]
      %v697 = vld [vmem:[#allocation5 + $0x140] sm:$0xff]
      %v698 = vsub.f32 %v696, %v694
      %v699 = vsub.f32 %v697, %v695
      %v700 = vmul.f32 %v696, %v696
      %v701 = vmul.f32 %v697, %v697
      %s702 = sadd.s32 %s368, 2048
      %v703 = vstv %s702
      %v704 = vadd.s32 %v382, %v703
      %vm705 = vcmp.lt.s32.totalorder %v704, 3000
      %v706 = vsel %vm705, %v698, 0.0
      %v707 = vsel %vm705, %v699, 0.0
      %v708 = vsel %vm705, %v700, 0.0
      %v709 = vsel %vm705, %v701, 0.0
      %v710 = vadd.f32 %v690, %v706
      %v711 = vadd.f32 %v691, %v707
      %v712 = vadd.f32 %v692, %v708
      %v713 = vadd.f32 %v693, %v709
      %v714 = vld [vmem:[#allocation2 + $0x88] sm:$0xff]
      %v715 = vld [vmem:[#allocation2 + $0x148] sm:$0xff]
      %v716 = vld [vmem:[#allocation5 + $0x88] sm:$0xff]
      %v717 = vld [vmem:[#allocation5 + $0x148] sm:$0xff]
      %v718 = vsub.f32 %v716, %v714
      %v719 = vsub.f32 %v717, %v715
      %v720 = vmul.f32 %v716, %v716
      %v721 = vmul.f32 %v717, %v717
      %s722 = sadd.s32 %s368, 2176
      %v723 = vstv %s722
      %v724 = vadd.s32 %v382, %v723
      %vm725 = vcmp.lt.s32.totalorder %v724, 3000
      %v726 = vsel %vm725, %v718, 0.0
      %v727 = vsel %vm725, %v719, 0.0
      %v728 = vsel %vm725, %v720, 0.0
      %v729 = vsel %vm725, %v721, 0.0
      %v730 = vadd.f32 %v710, %v726
      %v731 = vadd.f32 %v711, %v727
      %v732 = vadd.f32 %v712, %v728
      %v733 = vadd.f32 %v713, %v729
      %v734 = vld [vmem:[#allocation2 + $0x90] sm:$0xff]
      %v735 = vld [vmem:[#allocation2 + $0x150] sm:$0xff]
      %v736 = vld [vmem:[#allocation5 + $0x90] sm:$0xff]
      %v737 = vld [vmem:[#allocation5 + $0x150] sm:$0xff]
      %v738 = vsub.f32 %v736, %v734
      %v739 = vsub.f32 %v737, %v735
      %v740 = vmul.f32 %v736, %v736
      %v741 = vmul.f32 %v737, %v737
      %s742 = sadd.s32 %s368, 2304
      %v743 = vstv %s742
      %v744 = vadd.s32 %v382, %v743
      %vm745 = vcmp.lt.s32.totalorder %v744, 3000
      %v746 = vsel %vm745, %v738, 0.0
      %v747 = vsel %vm745, %v739, 0.0
      %v748 = vsel %vm745, %v740, 0.0
      %v749 = vsel %vm745, %v741, 0.0
      %v750 = vadd.f32 %v730, %v746
      %v751 = vadd.f32 %v731, %v747
      %v752 = vadd.f32 %v732, %v748
      %v753 = vadd.f32 %v733, %v749
      %v754 = vld [vmem:[#allocation2 + $0x98] sm:$0xff]
      %v755 = vld [vmem:[#allocation2 + $0x158] sm:$0xff]
      %v756 = vld [vmem:[#allocation5 + $0x98] sm:$0xff]
      %v757 = vld [vmem:[#allocation5 + $0x158] sm:$0xff]
      %v758 = vsub.f32 %v756, %v754
      %v759 = vsub.f32 %v757, %v755
      %v760 = vmul.f32 %v756, %v756
      %v761 = vmul.f32 %v757, %v757
      %s762 = sadd.s32 %s368, 2432
      %v763 = vstv %s762
      %v764 = vadd.s32 %v382, %v763
      %vm765 = vcmp.lt.s32.totalorder %v764, 3000
      %v766 = vsel %vm765, %v758, 0.0
      %v767 = vsel %vm765, %v759, 0.0
      %v768 = vsel %vm765, %v760, 0.0
      %v769 = vsel %vm765, %v761, 0.0
      %v770 = vadd.f32 %v750, %v766
      %v771 = vadd.f32 %v751, %v767
      %v772 = vadd.f32 %v752, %v768
      %v773 = vadd.f32 %v753, %v769
      %v774 = vld [vmem:[#allocation2 + $0xa0] sm:$0xff]
      %v775 = vld [vmem:[#allocation2 + $0x160] sm:$0xff]
      %v776 = vld [vmem:[#allocation5 + $0xa0] sm:$0xff]
      %v777 = vld [vmem:[#allocation5 + $0x160] sm:$0xff]
      %v778 = vsub.f32 %v776, %v774
      %v779 = vsub.f32 %v777, %v775
      %v780 = vmul.f32 %v776, %v776
      %v781 = vmul.f32 %v777, %v777
      %s782 = sadd.s32 %s368, 2560
      %v783 = vstv %s782
      %v784 = vadd.s32 %v382, %v783
      %vm785 = vcmp.lt.s32.totalorder %v784, 3000
      %v786 = vsel %vm785, %v778, 0.0
      %v787 = vsel %vm785, %v779, 0.0
      %v788 = vsel %vm785, %v780, 0.0
      %v789 = vsel %vm785, %v781, 0.0
      %v790 = vadd.f32 %v770, %v786
      %v791 = vadd.f32 %v771, %v787
      %v792 = vadd.f32 %v772, %v788
      %v793 = vadd.f32 %v773, %v789
      %v794 = vld [vmem:[#allocation2 + $0xa8] sm:$0xff]
      %v795 = vld [vmem:[#allocation2 + $0x168] sm:$0xff]
      %v796 = vld [vmem:[#allocation5 + $0xa8] sm:$0xff]
      %v797 = vld [vmem:[#allocation5 + $0x168] sm:$0xff]
      %v798 = vsub.f32 %v796, %v794
      %v799 = vsub.f32 %v797, %v795
      %v800 = vmul.f32 %v796, %v796
      %v801 = vmul.f32 %v797, %v797
      %s802 = sadd.s32 %s368, 2688
      %v803 = vstv %s802
      %v804 = vadd.s32 %v382, %v803
      %vm805 = vcmp.lt.s32.totalorder %v804, 3000
      %v806 = vsel %vm805, %v798, 0.0
      %v807 = vsel %vm805, %v799, 0.0
      %v808 = vsel %vm805, %v800, 0.0
      %v809 = vsel %vm805, %v801, 0.0
      %v810 = vadd.f32 %v790, %v806
      %v811 = vadd.f32 %v791, %v807
      %v812 = vadd.f32 %v792, %v808
      %v813 = vadd.f32 %v793, %v809
      %v814 = vld [vmem:[#allocation2 + $0xb0] sm:$0xff]
      %v815 = vld [vmem:[#allocation2 + $0x170] sm:$0xff]
      %v816 = vld [vmem:[#allocation5 + $0xb0] sm:$0xff]
      %v817 = vld [vmem:[#allocation5 + $0x170] sm:$0xff]
      %v818 = vsub.f32 %v816, %v814
      %v819 = vsub.f32 %v817, %v815
      %v820 = vmul.f32 %v816, %v816
      %v821 = vmul.f32 %v817, %v817
      %s822 = sadd.s32 %s368, 2816
      %v823 = vstv %s822
      %v824 = vadd.s32 %v382, %v823
      %vm825 = vcmp.lt.s32.totalorder %v824, 3000
      %v826 = vsel %vm825, %v818, 0.0
      %v827 = vsel %vm825, %v819, 0.0
      %v828 = vsel %vm825, %v820, 0.0
      %v829 = vsel %vm825, %v821, 0.0
      %v830 = vadd.f32 %v810, %v826
      %v831 = vadd.f32 %v811, %v827
      %v832 = vadd.f32 %v812, %v828
      %v833 = vadd.f32 %v813, %v829
      %v834 = vld [vmem:[#allocation2 + $0xb8] sm:$0xff]
      %v835 = vld [vmem:[#allocation2 + $0x178] sm:$0xff]
      %v836 = vld [vmem:[#allocation5 + $0xb8] sm:$0xff]
      %v837 = vld [vmem:[#allocation5 + $0x178] sm:$0xff]
      %v838 = vsub.f32 %v836, %v834
      %v839 = vsub.f32 %v837, %v835
      %v840 = vmul.f32 %v836, %v836
      %v841 = vmul.f32 %v837, %v837
      %s842 = sadd.s32 %s368, 2944
      %v843 = vstv %s842
      %v844 = vadd.s32 %v382, %v843
      %vm845 = vcmp.lt.s32.totalorder %v844, 3000
      %v846 = vsel %vm845, %v838, 0.0
      %v847 = vsel %vm845, %v839, 0.0
      %v848 = vsel %vm845, %v840, 0.0
      %v849 = vsel %vm845, %v841, 0.0
      %v850 = vadd.f32 %v830, %v846
      %v851 = vadd.f32 %v831, %v847
      %v852 = vadd.f32 %v832, %v848
      %v853 = vadd.f32 %v833, %v849
      %854 = vst [vmem:[#allocation7] sm:$0xff] %v850
      %855 = vst [vmem:[#allocation7 + $0x8] sm:$0xff] %v851
      %856 = vst [vmem:[#allocation8] sm:$0xff] %v852
      %857 = vst [vmem:[#allocation8 + $0x8] sm:$0xff] %v853
    $region29: #{tpu_custom_call.1} parent=1 // pred_fallthru
      _
    // Predicated region
    $region30: #{tpu_custom_call.1} parent=1 // pred_check
      _
    $region31: #{tpu_custom_call.1} parent=1 // pred_check_branch
      %859 = sbr.rel (0) target = $region33
    $region32: #{tpu_custom_call.1} parent=1 // pred_region
      %s861 = ssub.s32 256, 256
      %862 = vsyncadd [#allocation4], %s861
      %s863 = sshll.u32 [#allocation7], 4
      %s864 = int_to_ptr.vmem [resolvable:$true] %s863
      %869 = dma.vmem_to_hbm [thread:$0]  %s864, 256, %s2, [#allocation4], 128, 128, 8
    $region33: #{tpu_custom_call.1} parent=1 // pred_fallthru
      _
    // Predicated region
    $region34: #{tpu_custom_call.1} parent=1 // pred_check
      _
    $region35: #{tpu_custom_call.1} parent=1 // pred_check_branch
      %871 = sbr.rel (0) target = $region37
    $region36: #{tpu_custom_call.1} parent=1 // pred_region
      %s873 = ssub.s32 256, 256
      %874 = vsyncadd [#allocation9], %s873
      %s875 = sshll.u32 [#allocation8], 4
      %s876 = int_to_ptr.vmem [resolvable:$true] %s875
      %881 = dma.vmem_to_hbm [thread:$0]  %s876, 256, %s3, [#allocation9], 128, 128, 8
    $region37: #{tpu_custom_call.1} parent=1 // pred_fallthru
      _
    // Predicated region
    $region38: #{tpu_custom_call.1} parent=1 // pred_check
      _
    $region39: #{tpu_custom_call.1} parent=1 // pred_check_branch
      %883 = sbr.rel (0) target = $region41
    $region40: #{tpu_custom_call.1} parent=1 // pred_region
      %884 = dma.done [#allocation4], 256
    $region41: #{tpu_custom_call.1} parent=1 // pred_fallthru
      _
    // Predicated region
    $region42: #{tpu_custom_call.1} parent=1 // pred_check
      _
    $region43: #{tpu_custom_call.1} parent=1 // pred_check_branch
      %886 = sbr.rel (0) target = $region45
    $region44: #{tpu_custom_call.1} parent=1 // pred_region
      %887 = dma.done [#allocation9], 256
    $region45: #{tpu_custom_call.1} parent=1 // pred_fallthru
      _
    %888 = vsyncpa [#allocation3], 1
    %889 = vsyncpa [#allocation6], 1
    %890 = vsyncpa [#allocation4], 1
    %891 = vsyncpa [#allocation9], 1

</llo_original>
